<compile_context>
chip_gen: v5e
topology: v5e:2x2
jax: 0.10.0
libtpu: 0.0.40
codegen_flags: <defaults>
</compile_context>

<pallas_src>
import functools

import jax
import jax.numpy as jnp
from jax.experimental import pallas as pl
from jax.experimental.pallas import tpu as pltpu

_LANE = 128


def _round_up(x, m):
    return ((x + m - 1) // m) * m


def _padded_bytes(rows, cols, dtype):
    """VMEM footprint of a (rows, cols) array after (sublane, lane) tiling."""
    itemsize = jnp.dtype(dtype).itemsize
    sublane = 8 * (4 // itemsize)          # f32 -> 8, bf16 -> 16
    return _round_up(rows, sublane) * _round_up(cols, _LANE) * itemsize


def _vmem_capacity_bytes():
    try:
        return int(pltpu.get_tpu_info().vmem_capacity_bytes)
    except Exception:
        return 64 * 1024 * 1024            # conservative (v7x-sized) fallback


def _plan_tiling(N, F, H, E, K, slab):
    """Derive (row_tile, vmem_limit_bytes) from the actual chip's VMEM capacity."""
    cap = _vmem_capacity_bytes()
    limit = int(cap * 0.75)                # ~48 MiB on v7x (64 MiB/TC), ~96 MiB on v5e/v6e
    bf16, f32 = jnp.bfloat16, jnp.float32
    resident = 2 * (_padded_bytes(N, F, bf16)          # x (double-buffered by Pallas)
                    + _padded_bytes(F, H + 2, bf16)    # W1_aug
                    + _padded_bytes(H, E + 2, bf16)    # W2_aug
                    + _padded_bytes(E, K, f32))        # cluster centers^T
    scratch = (_padded_bytes(N, H, bf16)               # h1_pre (bf16 MXU operand)
               + _padded_bytes(N, H, f32)              # h1 = ELU(GAT-1)
               + _padded_bytes(N, E, bf16)             # h2_pre
               + _padded_bytes(N, E, f32)              # z (normalized, f32)
               + _padded_bytes(E, N, bf16)             # z^T (bf16 decoder operand)
               + _padded_bytes(N, 1, f32)              # attn_for_self column
               + _padded_bytes(1, N, f32))             # attn_for_neighs^T row
    budget = limit - resident - scratch - (2 << 20)    # headroom for compiler internals
    tq = None
    for t in (1024, 512, 256, 128, 64, 32, 16, 8):
        if N % t:
            continue
        streamed = 2 * (_padded_bytes(t, N, f32)       # M_enc in  (double-buffered)
                        + _padded_bytes(t, N, f32)     # A_pred out
                        + _padded_bytes(t, slab, f32)) # packed [z|q] out
        if streamed <= budget:
            tq = t
            break
    if tq is None:                                     # VMEM-starved or irregular N
        tq = next((t for t in (8, 16, 32, 64, 128) if N % t == 0), N)
    return tq, limit


# ----------------------------------------------------------------------------
# Fused kernel.
# ----------------------------------------------------------------------------
def _daegc_fused_kernel(x_ref, m_ref, w1_ref, w2_ref, ct_ref,
                        a_pred_ref, zq_ref,
                        h1p_b, h1_s, h2p_b, z_s, zT_b, scol_s, nrow_s,
                        *, alpha, v, tq, hid, emb, ncl, slab):
    f32 = jnp.float32
    bf16 = jnp.bfloat16
    p = pl.program_id(0)                 # 0: GAT-1, 1: GAT-2, 2: decoder + cluster Q
    r = pl.program_id(1)                 # row-tile index
    row0 = pl.multiple_of(r * tq, tq)

    def project(inp_bf16, w_aug_ref, width, hpre_b):
        # One MXU call yields [h | h.a_self | h.a_neigh] (a-vectors folded into W in wrapper).
        haug = jnp.dot(inp_bf16, w_aug_ref[...], preferred_element_type=f32)   # (N, width+2)
        hpre_b[...] = haug[:, :width].astype(bf16)                             # cast ONCE
        scol_s[...] = haug[:, width:width + 1]                                 # (N, 1)
        nrow_s[...] = jnp.transpose(haug[:, width + 1:width + 2])              # (1, N)

    def attention_tile():
        m_enc = m_ref[...]                                   # (tq, N): M where adj>0, -inf else
        mask = m_enc != -jnp.inf
        mval = jnp.where(mask, m_enc, 0.0)
        e = (scol_s[pl.ds(row0, tq), :] + nrow_s[...]) * mval
        e = jnp.where(e > 0, e, alpha * e)                   # LeakyReLU
        e = jnp.where(mask, e, -9e15)                        # adjacency mask
        e = jnp.exp(e - jnp.max(e, axis=1, keepdims=True))   # row softmax
        att = e * pl.reciprocal(jnp.sum(e, axis=1, keepdims=True), approx=True)
        return att.astype(bf16)

    def elu(x):
        return jnp.where(x > 0, x, jnp.exp(x) - 1.0)

    # ---- pass 0: GAT layer 1 -> h1 scratch ----------------------------------
    @pl.when(p == 0)
    def _pass0():
        @pl.when(r == 0)
        def _init0():
            project(x_ref[...], w1_ref, hid, h1p_b)
        att = attention_tile()
        h_prime = jnp.dot(att, h1p_b[...], preferred_element_type=f32)         # (tq, hid)
        h1_s[pl.ds(row0, tq), :] = elu(h_prime)

    # ---- pass 1: GAT layer 2 + row L2-normalize -> z scratch ----------------
    @pl.when(p == 1)
    def _pass1():
        @pl.when(r == 0)
        def _init1():
            project(h1_s[...].astype(bf16), w2_ref, emb, h2p_b)                # cast ONCE / pass
        att = attention_tile()
        h2 = elu(jnp.dot(att, h2p_b[...], preferred_element_type=f32))         # (tq, emb)
        nrm = jnp.sqrt(jnp.sum(h2 * h2, axis=1, keepdims=True))
        z_s[pl.ds(row0, tq), :] = h2 / jnp.maximum(nrm, 1e-12)                 # exact normalize

    # ---- pass 2: A_pred = sigmoid(z z^T), Student-t cluster Q ---------------
    @pl.when(p == 2)
    def _pass2():
        @pl.when(r == 0)
        def _init2():
            zT_b[...] = jnp.transpose(z_s[...]).astype(bf16)                   # transpose/cast ONCE
        zt = z_s[pl.ds(row0, tq), :]                                           # (tq, emb) f32
        logits = jnp.dot(zt.astype(bf16), zT_b[...], preferred_element_type=f32)  # (tq, N)
        a_pred_ref[...] = pl.reciprocal(1.0 + jnp.exp(-logits), approx=True)   # sigmoid

        ct = ct_ref[...]                                                       # (emb, ncl)
        c2 = jnp.sum(ct * ct, axis=0, keepdims=True)                           # (1, ncl)
        z2 = jnp.sum(zt * zt, axis=1, keepdims=True)                           # (tq, 1)
        zc = jnp.dot(zt, ct, preferred_element_type=f32)                       # (tq, ncl)
        dist2 = jnp.maximum(z2 + c2 - 2.0 * zc, 0.0)                           # clamped ||z-c||^2
        q = 1.0 / (1.0 + dist2 / v)
        expo = (v + 1.0) / 2.0
        if expo != 1.0:                                 # trace-time branch (v=1 skips pow)
            q = q ** expo
        q = q / jnp.sum(q, axis=1, keepdims=True)                              # exact row-normalize

        # Single lane-dense 128-wide store of the packed [z | q | pad] slab.
        pad = slab - emb - ncl
        parts = [zt, q]
        if pad > 0:
            parts.append(jnp.zeros((tq, pad), f32))
        zq_ref[...] = jnp.concatenate(parts, axis=1)


# ----------------------------------------------------------------------------
# Wrapper: single pallas_call for the full DAEGC forward.
# ----------------------------------------------------------------------------
def daegc_forward(x, adj, M, params, *, alpha, v, row_tile=None):
    N, F = x.shape
    H = params["W1"].shape[1]
    E = params["W2"].shape[1]
    K = params["cluster_layer"].shape[0]
    SLAB = _round_up(E + K, _LANE)                     # lane-dense packed [z | q] width

    tq, vmem_limit = _plan_tiling(N, F, H, E, K, SLAB)
    if row_tile is not None:
        tq = row_tile
    assert N % tq == 0, "row tile must divide N"
    T = N // tq
    last = T - 1

    bf16 = jnp.bfloat16
    # Fold the attention vectors into the projection: W_aug = [W | W a_self | W a_neigh].
    W1, W2 = params["W1"], params["W2"]
    w1_aug = jnp.concatenate(
        [W1, W1 @ params["a_self1"], W1 @ params["a_neigh1"]], axis=1).astype(bf16)
    w2_aug = jnp.concatenate(
        [W2, W2 @ params["a_self2"], W2 @ params["a_neigh2"]], axis=1).astype(bf16)
    cT = jnp.transpose(params["cluster_layer"]).astype(jnp.float32)            # (E, K)
    x_bf = x.astype(bf16)

    # Single streamed O(N^2) operand: M where adj>0, -inf where masked.  Exact support
    # semantics (masked attention scores never depend on M), and it halves the in-kernel
    # HBM read stream vs shipping adj and M separately.  For training loops with static
    # adj/M, hoist/precompute this encode once outside the step.
    m_enc = jnp.where(adj > 0, M.astype(jnp.float32), -jnp.inf)

    def m_map(p, r):
        # passes 0/1 walk row tiles; pass 2 does not need M -> park last block (no refetch).
        return (jnp.where(p < 2, r, last), 0)

    def out_map(p, r):
        # outputs only produced in pass 2; park block 0 before that (no garbage write-backs).
        return (jnp.where(p == 2, r, 0), 0)

    const = lambda p, r: (0, 0)

    kernel = functools.partial(_daegc_fused_kernel, alpha=float(alpha), v=float(v),
                               tq=tq, hid=H, emb=E, ncl=K, slab=SLAB)

    a_pred, zq = pl.pallas_call(
        kernel,
        out_shape=(
            jax.ShapeDtypeStruct((N, N), jnp.float32),       # A_pred
            jax.ShapeDtypeStruct((N, SLAB), jnp.float32),    # packed [z | q | pad]
        ),
        grid_spec=pltpu.PrefetchScalarGridSpec(
            num_scalar_prefetch=0,
            grid=(3, T),
            in_specs=[
                pl.BlockSpec((N, F), const),          # x (bf16, resident)
                pl.BlockSpec((tq, N), m_map),         # M_enc (streamed row tiles)
                pl.BlockSpec((F, H + 2), const),      # [W1 | W1 a_self | W1 a_neigh] (bf16)
                pl.BlockSpec((H, E + 2), const),      # [W2 | W2 a_self | W2 a_neigh] (bf16)
                pl.BlockSpec((E, K), const),          # cluster centers^T
            ],
            out_specs=(
                pl.BlockSpec((tq, N), out_map),
                pl.BlockSpec((tq, SLAB), out_map),
            ),
            scratch_shapes=[
                pltpu.VMEM((N, H), bf16),             # h1_pre (bf16 MXU operand, cast once)
                pltpu.VMEM((N, H), jnp.float32),      # h1 = ELU(GAT layer-1 output)
                pltpu.VMEM((N, E), bf16),             # h2_pre
                pltpu.VMEM((N, E), jnp.float32),      # z (normalized, exact f32)
                pltpu.VMEM((E, N), bf16),             # z^T (bf16 decoder operand, cast once)
                pltpu.VMEM((N, 1), jnp.float32),      # attn_for_self column
                pltpu.VMEM((1, N), jnp.float32),      # attn_for_neighs^T row
            ],
        ),
        compiler_params=pltpu.CompilerParams(
            # TODO(synk): shard the row-tile axis across v7x's two TensorCores (core_map +
            # VMEM_SHARED h/z slabs); kept single-core "arbitrary" since passes share scratch.
            dimension_semantics=("arbitrary", "arbitrary"),
            vmem_limit_bytes=int(vmem_limit),
        ),
    )(x_bf, m_enc, w1_aug, w2_aug, cT)

    z = zq[:, :E]
    q = zq[:, E:E + K]
    return a_pred, z, q


# ----------------------------------------------------------------------------
# Deterministic parameter init (xavier-style), matching the PyTorch shapes.
# ----------------------------------------------------------------------------
def init_params(key, num_features, hidden_size, embedding_size, num_clusters):
    ks = jax.random.split(key, 7)

    def xavier_uniform(k, shape, gain=1.414):
        fan_in, fan_out = shape[0], shape[1]
        bound = gain * (6.0 / (fan_in + fan_out)) ** 0.5
        return jax.random.uniform(k, shape, jnp.float32, -bound, bound)

    def xavier_normal(k, shape):
        fan_in, fan_out = shape[0], shape[1]
        std = (2.0 / (fan_in + fan_out)) ** 0.5
        return std * jax.random.normal(k, shape, jnp.float32)

    return {
        "W1": xavier_uniform(ks[0], (num_features, hidden_size)),
        "a_self1": xavier_uniform(ks[1], (hidden_size, 1)),
        "a_neigh1": xavier_uniform(ks[2], (hidden_size, 1)),
        "W2": xavier_uniform(ks[3], (hidden_size, embedding_size)),
        "a_self2": xavier_uniform(ks[4], (embedding_size, 1)),
        "a_neigh2": xavier_uniform(ks[5], (embedding_size, 1)),
        "cluster_layer": xavier_normal(ks[6], (num_clusters, embedding_size)),
    }


if __name__ == "__main__":
    # Small, DAEGC-consistent shapes
    N = 64              # number of graph nodes
    num_features = 32
    hidden_size = 32
    embedding_size = 16
    num_clusters = 8
    alpha = 0.2
    v = 1

    key = jax.random.PRNGKey(0)
    k_x, k_adj, k_m, k_p = jax.random.split(key, 4)

    x = jax.random.normal(k_x, (N, num_features), jnp.float32)

    # symmetric 0/1 adjacency with self-loops
    a = (jax.random.uniform(k_adj, (N, N)) < 0.15).astype(jnp.float32)
    adj = jnp.clip(a + a.T + jnp.eye(N, dtype=jnp.float32), 0.0, 1.0)

    # proximity matrix M (e.g. normalized transition matrix), non-negative
    deg = jnp.sum(adj, axis=1, keepdims=True)
    M = adj / jnp.maximum(deg, 1.0)

    params = init_params(k_p, num_features, hidden_size, embedding_size, num_clusters)

    fwd = jax.jit(functools.partial(daegc_forward, alpha=alpha, v=v))
    A_pred, z, q = fwd(x, adj, M, params)
    jax.block_until_ready((A_pred, z, q))

    assert A_pred.shape == (N, N)
    assert z.shape == (N, embedding_size)
    assert q.shape == (N, num_clusters)
    assert bool(jnp.all(jnp.isfinite(A_pred)))
    assert bool(jnp.all(jnp.isfinite(z)))
    assert bool(jnp.all(jnp.isfinite(q)))
    # q rows should sum to 1 (exact row-normalization in-kernel)
    assert bool(jnp.allclose(jnp.sum(q, axis=1), 1.0, atol=1e-3))
    # z rows should be (approximately) unit-norm
    assert bool(jnp.allclose(jnp.sum(z * z, axis=1), 1.0, atol=1e-3))

    print("KERNEL_OK")
</pallas_src>

<mosaic_0001>
module attributes {stable_mosaic.version = 11 : i64} {
  func.func @_daegc_fused_kernel(%arg0: i32, %arg1: i32, %arg2: memref<64x32xbf16, #tpu.memory_space<vmem>>, %arg3: memref<64x64xf32, #tpu.memory_space<vmem>>, %arg4: memref<32x34xbf16, #tpu.memory_space<vmem>>, %arg5: memref<32x18xbf16, #tpu.memory_space<vmem>>, %arg6: memref<16x8xf32, #tpu.memory_space<vmem>>, %arg7: memref<64x64xf32, #tpu.memory_space<vmem>>, %arg8: memref<64x128xf32, #tpu.memory_space<vmem>>, %arg9: memref<64x32xbf16, #tpu.memory_space<vmem>>, %arg10: memref<64x32xf32, #tpu.memory_space<vmem>>, %arg11: memref<64x16xbf16, #tpu.memory_space<vmem>>, %arg12: memref<64x16xf32, #tpu.memory_space<vmem>>, %arg13: memref<16x64xbf16, #tpu.memory_space<vmem>>, %arg14: memref<64x1xf32, #tpu.memory_space<vmem>>, %arg15: memref<1x64xf32, #tpu.memory_space<vmem>>) attributes {dimension_semantics = [#tpu.dimension_semantics<arbitrary>, #tpu.dimension_semantics<arbitrary>], iteration_bounds = array<i64: 3, 1>, scalar_prefetch = 0 : i64, scratch_operands = 7 : i64, tpu.core_type = #tpu.core_type<tc>, window_params = [{pipeline_mode = #tpu.pipeline_mode<synchronous>, transform_indices = @transform_0, window_bounds = array<i64: 64, 32>}, {transform_indices = @transform_1, window_bounds = array<i64: 64, 64>}, {pipeline_mode = #tpu.pipeline_mode<synchronous>, transform_indices = @transform_2, window_bounds = array<i64: 32, 34>}, {pipeline_mode = #tpu.pipeline_mode<synchronous>, transform_indices = @transform_3, window_bounds = array<i64: 32, 18>}, {pipeline_mode = #tpu.pipeline_mode<synchronous>, transform_indices = @transform_4, window_bounds = array<i64: 16, 8>}, {transform_indices = @transform_5, window_bounds = array<i64: 64, 64>}, {transform_indices = @transform_6, window_bounds = array<i64: 64, 128>}]} {
    %c64_i32 = arith.constant 64 : i32
    %0 = arith.muli %arg1, %c64_i32 : i32
    %1 = tpu.assume_multiple %0, 64 : i32
    %c0_i32 = arith.constant 0 : i32
    %2 = arith.cmpi eq, %arg0, %c0_i32 : i32
    %3 = arith.extui %2 : i1 to i32
    %c0_i32_0 = arith.constant 0 : i32
    %4 = arith.cmpi ne, %3, %c0_i32_0 : i32
    scf.if %4 {
      %c0_i32_3 = arith.constant 0 : i32
      %11 = arith.cmpi eq, %arg1, %c0_i32_3 : i32
      %12 = arith.extui %11 : i1 to i32
      %c0_i32_4 = arith.constant 0 : i32
      %13 = arith.cmpi ne, %12, %c0_i32_4 : i32
      scf.if %13 {
        %c0_21 = arith.constant 0 : index
        %c0_22 = arith.constant 0 : index
        %54 = vector.load %arg2[%c0_21, %c0_22] : memref<64x32xbf16, #tpu.memory_space<vmem>>, vector<64x32xbf16>
        %c0_23 = arith.constant 0 : index
        %c0_24 = arith.constant 0 : index
        %55 = vector.load %arg4[%c0_23, %c0_24] : memref<32x34xbf16, #tpu.memory_space<vmem>>, vector<32x34xbf16>
        %cst_25 = arith.constant dense<0.000000e+00> : vector<64x34xf32>
        %56 = tpu.matmul %54, %55, %cst_25 {dimension_numbers = #tpu.dot_dimension_numbers<[1], [0], [0], [1], [0, 0, 1, 1], [], []>} : vector<64x32xbf16>, vector<32x34xbf16>, vector<64x34xf32> -> vector<64x34xf32>
        %57 = vector.extract_strided_slice %56 {offsets = [0, 0], sizes = [64, 32], strides = [1, 1]} : vector<64x34xf32> to vector<64x32xf32>
        %58 = arith.truncf %57 : vector<64x32xf32> to vector<64x32xbf16>
        %c0_26 = arith.constant 0 : index
        %c0_27 = arith.constant 0 : index
        %59 = vector.load %arg9[%c0_26, %c0_27] : memref<64x32xbf16, #tpu.memory_space<vmem>>, vector<64x32xbf16>
        tpu.vector_store %arg9[%c0_26, %c0_27], %58 {strides = array<i32>} : memref<64x32xbf16, #tpu.memory_space<vmem>>, vector<64x32xbf16>,
        %60 = vector.extract_strided_slice %56 {offsets = [0, 32], sizes = [64, 1], strides = [1, 1]} : vector<64x34xf32> to vector<64x1xf32>
        %c0_28 = arith.constant 0 : index
        %c0_29 = arith.constant 0 : index
        %61 = vector.load %arg14[%c0_28, %c0_29] : memref<64x1xf32, #tpu.memory_space<vmem>>, vector<64x1xf32>
        tpu.vector_store %arg14[%c0_28, %c0_29], %60 {strides = array<i32>} : memref<64x1xf32, #tpu.memory_space<vmem>>, vector<64x1xf32>,
        %62 = vector.extract_strided_slice %56 {offsets = [0, 33], sizes = [64, 1], strides = [1, 1]} : vector<64x34xf32> to vector<64x1xf32>
        %63 = tpu.transpose %62, [1, 0] : vector<64x1xf32> -> vector<1x64xf32>
        %c0_30 = arith.constant 0 : index
        %c0_31 = arith.constant 0 : index
        %64 = vector.load %arg15[%c0_30, %c0_31] : memref<1x64xf32, #tpu.memory_space<vmem>>, vector<1x64xf32>
        tpu.vector_store %arg15[%c0_30, %c0_31], %63 {strides = array<i32>} : memref<1x64xf32, #tpu.memory_space<vmem>>, vector<1x64xf32>,
      } else {
      }
      %c0 = arith.constant 0 : index
      %c0_5 = arith.constant 0 : index
      %14 = vector.load %arg3[%c0, %c0_5] : memref<64x64xf32, #tpu.memory_space<vmem>>, vector<64x64xf32>
      %cst = arith.constant 0xFF800000 : f32
      %15 = vector.broadcast %cst : f32 to vector<64x64xf32>
      %16 = arith.cmpf one, %14, %15 : vector<64x64xf32>
      %cst_6 = arith.constant 0.000000e+00 : f32
      %17 = vector.broadcast %cst_6 : f32 to vector<64x64xf32>
      %18 = arith.select %16, %14, %17 : vector<64x64xi1>, vector<64x64xf32>
      %19 = arith.index_cast %1 : i32 to index
      %c0_7 = arith.constant 0 : index
      %20 = vector.load %arg14[%19, %c0_7] : memref<64x1xf32, #tpu.memory_space<vmem>>, vector<64x1xf32>
      %c0_8 = arith.constant 0 : index
      %c0_9 = arith.constant 0 : index
      %21 = vector.load %arg15[%c0_8, %c0_9] : memref<1x64xf32, #tpu.memory_space<vmem>>, vector<1x64xf32>
      %22 = vector.broadcast %20 : vector<64x1xf32> to vector<64x64xf32>
      %23 = vector.broadcast %21 : vector<1x64xf32> to vector<64x64xf32>
      %24 = arith.addf %22, %23 : vector<64x64xf32>
      %25 = arith.mulf %24, %18 : vector<64x64xf32>
      %cst_10 = arith.constant 0.000000e+00 : f32
      %26 = vector.broadcast %cst_10 : f32 to vector<64x64xf32>
      %27 = arith.cmpf ogt, %25, %26 : vector<64x64xf32>
      %cst_11 = arith.constant 2.000000e-01 : f32
      %28 = vector.broadcast %cst_11 : f32 to vector<64x64xf32>
      %29 = arith.mulf %28, %25 : vector<64x64xf32>
      %30 = arith.select %27, %25, %29 : vector<64x64xi1>, vector<64x64xf32>
      %cst_12 = arith.constant -9.000000e+15 : f32
      %31 = vector.broadcast %cst_12 : f32 to vector<64x64xf32>
      %32 = arith.select %16, %30, %31 : vector<64x64xi1>, vector<64x64xf32>
      %cst_13 = arith.constant dense<0xFF800000> : vector<64xf32>
      %33 = vector.multi_reduction <maximumf>, %32, %cst_13 [1] : vector<64x64xf32> to vector<64xf32>
      %34 = vector.shape_cast %33 : vector<64xf32> to vector<64x1xf32>
      %35 = vector.broadcast %34 : vector<64x1xf32> to vector<64x64xf32>
      %36 = arith.subf %32, %35 : vector<64x64xf32>
      %37 = math.exp %36 : vector<64x64xf32>
      %cst_14 = arith.constant dense<0.000000e+00> : vector<64xf32>
      %38 = vector.multi_reduction <add>, %37, %cst_14 [1] : vector<64x64xf32> to vector<64xf32>
      %39 = vector.shape_cast %38 : vector<64xf32> to vector<64x1xf32>
      %40 = tpu.reciprocal %39 {approx = true} : vector<64x1xf32> -> vector<64x1xf32>
      %41 = vector.broadcast %40 : vector<64x1xf32> to vector<64x64xf32>
      %42 = arith.mulf %37, %41 : vector<64x64xf32>
      %43 = arith.truncf %42 : vector<64x64xf32> to vector<64x64xbf16>
      %c0_15 = arith.constant 0 : index
      %c0_16 = arith.constant 0 : index
      %44 = vector.load %arg9[%c0_15, %c0_16] : memref<64x32xbf16, #tpu.memory_space<vmem>>, vector<64x32xbf16>
      %cst_17 = arith.constant dense<0.000000e+00> : vector<64x32xf32>
      %45 = tpu.matmul %43, %44, %cst_17 {dimension_numbers = #tpu.dot_dimension_numbers<[1], [0], [0], [1], [0, 0, 1, 1], [], []>} : vector<64x64xbf16>, vector<64x32xbf16>, vector<64x32xf32> -> vector<64x32xf32>
      %cst_18 = arith.constant 0.000000e+00 : f32
      %46 = vector.broadcast %cst_18 : f32 to vector<64x32xf32>
      %47 = arith.cmpf ogt, %45, %46 : vector<64x32xf32>
      %48 = math.exp %45 : vector<64x32xf32>
      %cst_19 = arith.constant 1.000000e+00 : f32
      %49 = vector.broadcast %cst_19 : f32 to vector<64x32xf32>
      %50 = arith.subf %48, %49 : vector<64x32xf32>
      %51 = arith.select %47, %45, %50 : vector<64x32xi1>, vector<64x32xf32>
      %52 = arith.index_cast %1 : i32 to index
      %c0_20 = arith.constant 0 : index
      %53 = vector.load %arg10[%52, %c0_20] : memref<64x32xf32, #tpu.memory_space<vmem>>, vector<64x32xf32>
      tpu.vector_store %arg10[%52, %c0_20], %51 {strides = array<i32>} : memref<64x32xf32, #tpu.memory_space<vmem>>, vector<64x32xf32>,
    } else {
    }
    %c1_i32 = arith.constant 1 : i32
    %5 = arith.cmpi eq, %arg0, %c1_i32 : i32
    %6 = arith.extui %5 : i1 to i32
    %c0_i32_1 = arith.constant 0 : i32
    %7 = arith.cmpi ne, %6, %c0_i32_1 : i32
    scf.if %7 {
      %c0_i32_3 = arith.constant 0 : i32
      %11 = arith.cmpi eq, %arg1, %c0_i32_3 : i32
      %12 = arith.extui %11 : i1 to i32
      %c0_i32_4 = arith.constant 0 : i32
      %13 = arith.cmpi ne, %12, %c0_i32_4 : i32
      scf.if %13 {
        %c0_23 = arith.constant 0 : index
        %c0_24 = arith.constant 0 : index
        %62 = vector.load %arg10[%c0_23, %c0_24] : memref<64x32xf32, #tpu.memory_space<vmem>>, vector<64x32xf32>
        %63 = arith.truncf %62 : vector<64x32xf32> to vector<64x32xbf16>
        %c0_25 = arith.constant 0 : index
        %c0_26 = arith.constant 0 : index
        %64 = vector.load %arg5[%c0_25, %c0_26] : memref<32x18xbf16, #tpu.memory_space<vmem>>, vector<32x18xbf16>
        %cst_27 = arith.constant dense<0.000000e+00> : vector<64x18xf32>
        %65 = tpu.matmul %63, %64, %cst_27 {dimension_numbers = #tpu.dot_dimension_numbers<[1], [0], [0], [1], [0, 0, 1, 1], [], []>} : vector<64x32xbf16>, vector<32x18xbf16>, vector<64x18xf32> -> vector<64x18xf32>
        %66 = vector.extract_strided_slice %65 {offsets = [0, 0], sizes = [64, 16], strides = [1, 1]} : vector<64x18xf32> to vector<64x16xf32>
        %67 = arith.truncf %66 : vector<64x16xf32> to vector<64x16xbf16>
        %c0_28 = arith.constant 0 : index
        %c0_29 = arith.constant 0 : index
        %68 = vector.load %arg11[%c0_28, %c0_29] : memref<64x16xbf16, #tpu.memory_space<vmem>>, vector<64x16xbf16>
        tpu.vector_store %arg11[%c0_28, %c0_29], %67 {strides = array<i32>} : memref<64x16xbf16, #tpu.memory_space<vmem>>, vector<64x16xbf16>,
        %69 = vector.extract_strided_slice %65 {offsets = [0, 16], sizes = [64, 1], strides = [1, 1]} : vector<64x18xf32> to vector<64x1xf32>
        %c0_30 = arith.constant 0 : index
        %c0_31 = arith.constant 0 : index
        %70 = vector.load %arg14[%c0_30, %c0_31] : memref<64x1xf32, #tpu.memory_space<vmem>>, vector<64x1xf32>
        tpu.vector_store %arg14[%c0_30, %c0_31], %69 {strides = array<i32>} : memref<64x1xf32, #tpu.memory_space<vmem>>, vector<64x1xf32>,
        %71 = vector.extract_strided_slice %65 {offsets = [0, 17], sizes = [64, 1], strides = [1, 1]} : vector<64x18xf32> to vector<64x1xf32>
        %72 = tpu.transpose %71, [1, 0] : vector<64x1xf32> -> vector<1x64xf32>
        %c0_32 = arith.constant 0 : index
        %c0_33 = arith.constant 0 : index
        %73 = vector.load %arg15[%c0_32, %c0_33] : memref<1x64xf32, #tpu.memory_space<vmem>>, vector<1x64xf32>
        tpu.vector_store %arg15[%c0_32, %c0_33], %72 {strides = array<i32>} : memref<1x64xf32, #tpu.memory_space<vmem>>, vector<1x64xf32>,
      } else {
      }
      %c0 = arith.constant 0 : index
      %c0_5 = arith.constant 0 : index
      %14 = vector.load %arg3[%c0, %c0_5] : memref<64x64xf32, #tpu.memory_space<vmem>>, vector<64x64xf32>
      %cst = arith.constant 0xFF800000 : f32
      %15 = vector.broadcast %cst : f32 to vector<64x64xf32>
      %16 = arith.cmpf one, %14, %15 : vector<64x64xf32>
      %cst_6 = arith.constant 0.000000e+00 : f32
      %17 = vector.broadcast %cst_6 : f32 to vector<64x64xf32>
      %18 = arith.select %16, %14, %17 : vector<64x64xi1>, vector<64x64xf32>
      %19 = arith.index_cast %1 : i32 to index
      %c0_7 = arith.constant 0 : index
      %20 = vector.load %arg14[%19, %c0_7] : memref<64x1xf32, #tpu.memory_space<vmem>>, vector<64x1xf32>
      %c0_8 = arith.constant 0 : index
      %c0_9 = arith.constant 0 : index
      %21 = vector.load %arg15[%c0_8, %c0_9] : memref<1x64xf32, #tpu.memory_space<vmem>>, vector<1x64xf32>
      %22 = vector.broadcast %20 : vector<64x1xf32> to vector<64x64xf32>
      %23 = vector.broadcast %21 : vector<1x64xf32> to vector<64x64xf32>
      %24 = arith.addf %22, %23 : vector<64x64xf32>
      %25 = arith.mulf %24, %18 : vector<64x64xf32>
      %cst_10 = arith.constant 0.000000e+00 : f32
      %26 = vector.broadcast %cst_10 : f32 to vector<64x64xf32>
      %27 = arith.cmpf ogt, %25, %26 : vector<64x64xf32>
      %cst_11 = arith.constant 2.000000e-01 : f32
      %28 = vector.broadcast %cst_11 : f32 to vector<64x64xf32>
      %29 = arith.mulf %28, %25 : vector<64x64xf32>
      %30 = arith.select %27, %25, %29 : vector<64x64xi1>, vector<64x64xf32>
      %cst_12 = arith.constant -9.000000e+15 : f32
      %31 = vector.broadcast %cst_12 : f32 to vector<64x64xf32>
      %32 = arith.select %16, %30, %31 : vector<64x64xi1>, vector<64x64xf32>
      %cst_13 = arith.constant dense<0xFF800000> : vector<64xf32>
      %33 = vector.multi_reduction <maximumf>, %32, %cst_13 [1] : vector<64x64xf32> to vector<64xf32>
      %34 = vector.shape_cast %33 : vector<64xf32> to vector<64x1xf32>
      %35 = vector.broadcast %34 : vector<64x1xf32> to vector<64x64xf32>
      %36 = arith.subf %32, %35 : vector<64x64xf32>
      %37 = math.exp %36 : vector<64x64xf32>
      %cst_14 = arith.constant dense<0.000000e+00> : vector<64xf32>
      %38 = vector.multi_reduction <add>, %37, %cst_14 [1] : vector<64x64xf32> to vector<64xf32>
      %39 = vector.shape_cast %38 : vector<64xf32> to vector<64x1xf32>
      %40 = tpu.reciprocal %39 {approx = true} : vector<64x1xf32> -> vector<64x1xf32>
      %41 = vector.broadcast %40 : vector<64x1xf32> to vector<64x64xf32>
      %42 = arith.mulf %37, %41 : vector<64x64xf32>
      %43 = arith.truncf %42 : vector<64x64xf32> to vector<64x64xbf16>
      %c0_15 = arith.constant 0 : index
      %c0_16 = arith.constant 0 : index
      %44 = vector.load %arg11[%c0_15, %c0_16] : memref<64x16xbf16, #tpu.memory_space<vmem>>, vector<64x16xbf16>
      %cst_17 = arith.constant dense<0.000000e+00> : vector<64x16xf32>
      %45 = tpu.matmul %43, %44, %cst_17 {dimension_numbers = #tpu.dot_dimension_numbers<[1], [0], [0], [1], [0, 0, 1, 1], [], []>} : vector<64x64xbf16>, vector<64x16xbf16>, vector<64x16xf32> -> vector<64x16xf32>
      %cst_18 = arith.constant 0.000000e+00 : f32
      %46 = vector.broadcast %cst_18 : f32 to vector<64x16xf32>
      %47 = arith.cmpf ogt, %45, %46 : vector<64x16xf32>
      %48 = math.exp %45 : vector<64x16xf32>
      %cst_19 = arith.constant 1.000000e+00 : f32
      %49 = vector.broadcast %cst_19 : f32 to vector<64x16xf32>
      %50 = arith.subf %48, %49 : vector<64x16xf32>
      %51 = arith.select %47, %45, %50 : vector<64x16xi1>, vector<64x16xf32>
      %52 = arith.mulf %51, %51 : vector<64x16xf32>
      %cst_20 = arith.constant dense<0.000000e+00> : vector<64xf32>
      %53 = vector.multi_reduction <add>, %52, %cst_20 [1] : vector<64x16xf32> to vector<64xf32>
      %54 = vector.shape_cast %53 : vector<64xf32> to vector<64x1xf32>
      %55 = math.sqrt %54 : vector<64x1xf32>
      %cst_21 = arith.constant 9.99999996E-13 : f32
      %56 = vector.broadcast %cst_21 : f32 to vector<64x1xf32>
      %57 = arith.maximumf %55, %56 : vector<64x1xf32>
      %58 = vector.broadcast %57 : vector<64x1xf32> to vector<64x16xf32>
      %59 = arith.divf %51, %58 : vector<64x16xf32>
      %60 = arith.index_cast %1 : i32 to index
      %c0_22 = arith.constant 0 : index
      %61 = vector.load %arg12[%60, %c0_22] : memref<64x16xf32, #tpu.memory_space<vmem>>, vector<64x16xf32>
      tpu.vector_store %arg12[%60, %c0_22], %59 {strides = array<i32>} : memref<64x16xf32, #tpu.memory_space<vmem>>, vector<64x16xf32>,
    } else {
    }
    %c2_i32 = arith.constant 2 : i32
    %8 = arith.cmpi eq, %arg0, %c2_i32 : i32
    %9 = arith.extui %8 : i1 to i32
    %c0_i32_2 = arith.constant 0 : i32
    %10 = arith.cmpi ne, %9, %c0_i32_2 : i32
    scf.if %10 {
      %c0_i32_3 = arith.constant 0 : i32
      %11 = arith.cmpi eq, %arg1, %c0_i32_3 : i32
      %12 = arith.extui %11 : i1 to i32
      %c0_i32_4 = arith.constant 0 : i32
      %13 = arith.cmpi ne, %12, %c0_i32_4 : i32
      scf.if %13 {
        %c0_25 = arith.constant 0 : index
        %c0_26 = arith.constant 0 : index
        %55 = vector.load %arg12[%c0_25, %c0_26] : memref<64x16xf32, #tpu.memory_space<vmem>>, vector<64x16xf32>
        %56 = tpu.transpose %55, [1, 0] : vector<64x16xf32> -> vector<16x64xf32>
        %57 = arith.truncf %56 : vector<16x64xf32> to vector<16x64xbf16>
        %c0_27 = arith.constant 0 : index
        %c0_28 = arith.constant 0 : index
        %58 = vector.load %arg13[%c0_27, %c0_28] : memref<16x64xbf16, #tpu.memory_space<vmem>>, vector<16x64xbf16>
        tpu.vector_store %arg13[%c0_27, %c0_28], %57 {strides = array<i32>} : memref<16x64xbf16, #tpu.memory_space<vmem>>, vector<16x64xbf16>,
      } else {
      }
      %14 = arith.index_cast %1 : i32 to index
      %c0 = arith.constant 0 : index
      %15 = vector.load %arg12[%14, %c0] : memref<64x16xf32, #tpu.memory_space<vmem>>, vector<64x16xf32>
      %16 = arith.truncf %15 : vector<64x16xf32> to vector<64x16xbf16>
      %c0_5 = arith.constant 0 : index
      %c0_6 = arith.constant 0 : index
      %17 = vector.load %arg13[%c0_5, %c0_6] : memref<16x64xbf16, #tpu.memory_space<vmem>>, vector<16x64xbf16>
      %cst = arith.constant dense<0.000000e+00> : vector<64x64xf32>
      %18 = tpu.matmul %16, %17, %cst {dimension_numbers = #tpu.dot_dimension_numbers<[1], [0], [0], [1], [0, 0, 1, 1], [], []>} : vector<64x16xbf16>, vector<16x64xbf16>, vector<64x64xf32> -> vector<64x64xf32>
      %cst_7 = arith.constant 0.000000e+00 : f32
      %19 = vector.broadcast %cst_7 : f32 to vector<64x64xf32>
      %20 = arith.subf %19, %18 : vector<64x64xf32>
      %21 = math.exp %20 : vector<64x64xf32>
      %cst_8 = arith.constant 1.000000e+00 : f32
      %22 = vector.broadcast %cst_8 : f32 to vector<64x64xf32>
      %23 = arith.addf %22, %21 : vector<64x64xf32>
      %24 = tpu.reciprocal %23 {approx = true} : vector<64x64xf32> -> vector<64x64xf32>
      %c0_9 = arith.constant 0 : index
      %c0_10 = arith.constant 0 : index
      %25 = vector.load %arg7[%c0_9, %c0_10] : memref<64x64xf32, #tpu.memory_space<vmem>>, vector<64x64xf32>
      tpu.vector_store %arg7[%c0_9, %c0_10], %24 {strides = array<i32>} : memref<64x64xf32, #tpu.memory_space<vmem>>, vector<64x64xf32>,
      %c0_11 = arith.constant 0 : index
      %c0_12 = arith.constant 0 : index
      %26 = vector.load %arg6[%c0_11, %c0_12] : memref<16x8xf32, #tpu.memory_space<vmem>>, vector<16x8xf32>
      %27 = arith.mulf %26, %26 : vector<16x8xf32>
      %cst_13 = arith.constant dense<0.000000e+00> : vector<8xf32>
      %28 = vector.multi_reduction <add>, %27, %cst_13 [0] : vector<16x8xf32> to vector<8xf32>
      %29 = vector.shape_cast %28 : vector<8xf32> to vector<1x8xf32>
      %30 = arith.mulf %15, %15 : vector<64x16xf32>
      %cst_14 = arith.constant dense<0.000000e+00> : vector<64xf32>
      %31 = vector.multi_reduction <add>, %30, %cst_14 [1] : vector<64x16xf32> to vector<64xf32>
      %32 = vector.shape_cast %31 : vector<64xf32> to vector<64x1xf32>
      %cst_15 = arith.constant dense<0.000000e+00> : vector<64x8xf32>
      %33 = tpu.matmul %15, %26, %cst_15 {dimension_numbers = #tpu.dot_dimension_numbers<[1], [0], [0], [1], [0, 0, 1, 1], [], []>} : vector<64x16xf32>, vector<16x8xf32>, vector<64x8xf32> -> vector<64x8xf32>
      %34 = vector.broadcast %32 : vector<64x1xf32> to vector<64x8xf32>
      %35 = vector.broadcast %29 : vector<1x8xf32> to vector<64x8xf32>
      %36 = arith.addf %34, %35 : vector<64x8xf32>
      %cst_16 = arith.constant 2.000000e+00 : f32
      %37 = vector.broadcast %cst_16 : f32 to vector<64x8xf32>
      %38 = arith.mulf %37, %33 : vector<64x8xf32>
      %39 = arith.subf %36, %38 : vector<64x8xf32>
      %cst_17 = arith.constant 0.000000e+00 : f32
      %40 = vector.broadcast %cst_17 : f32 to vector<64x8xf32>
      %41 = arith.maximumf %39, %40 : vector<64x8xf32>
      %cst_18 = arith.constant 1.000000e+00 : f32
      %42 = vector.broadcast %cst_18 : f32 to vector<64x8xf32>
      %43 = arith.divf %41, %42 : vector<64x8xf32>
      %cst_19 = arith.constant 1.000000e+00 : f32
      %44 = vector.broadcast %cst_19 : f32 to vector<64x8xf32>
      %45 = arith.addf %44, %43 : vector<64x8xf32>
      %cst_20 = arith.constant 1.000000e+00 : f32
      %46 = vector.broadcast %cst_20 : f32 to vector<64x8xf32>
      %47 = arith.divf %46, %45 : vector<64x8xf32>
      %cst_21 = arith.constant dense<0.000000e+00> : vector<64xf32>
      %48 = vector.multi_reduction <add>, %47, %cst_21 [1] : vector<64x8xf32> to vector<64xf32>
      %49 = vector.shape_cast %48 : vector<64xf32> to vector<64x1xf32>
      %50 = vector.broadcast %49 : vector<64x1xf32> to vector<64x8xf32>
      %51 = arith.divf %47, %50 : vector<64x8xf32>
      %cst_22 = arith.constant 0.000000e+00 : f32
      %52 = vector.broadcast %cst_22 : f32 to vector<64x104xf32>
      %53 = tpu.concatenate %15, %51, %52 in 1 : vector<64x16xf32>, vector<64x8xf32>, vector<64x104xf32> -> vector<64x128xf32>
      %c0_23 = arith.constant 0 : index
      %c0_24 = arith.constant 0 : index
      %54 = vector.load %arg8[%c0_23, %c0_24] : memref<64x128xf32, #tpu.memory_space<vmem>>, vector<64x128xf32>
      tpu.vector_store %arg8[%c0_23, %c0_24], %53 {strides = array<i32>} : memref<64x128xf32, #tpu.memory_space<vmem>>, vector<64x128xf32>,
    } else {
    }
    return
  }
  func.func @transform_0(%arg0: i32, %arg1: i32) -> (i32, i32) {
    %c0_i32 = arith.constant 0 : i32
    %c0_i32_0 = arith.constant 0 : i32
    %c0_i32_1 = arith.constant 0 : i32
    return %c0_i32, %c0_i32_0 : i32, i32
  }
  func.func @transform_1(%arg0: i32, %arg1: i32) -> (i32, i32) {
    %c2_i32 = arith.constant 2 : i32
    %0 = arith.cmpi slt, %arg0, %c2_i32 : i32
    %c0_i32 = arith.constant 0 : i32
    %1 = arith.select %0, %arg1, %c0_i32 : i32
    %c0_i32_0 = arith.constant 0 : i32
    %c0_i32_1 = arith.constant 0 : i32
    return %1, %c0_i32_0 : i32, i32
  }
  func.func @transform_2(%arg0: i32, %arg1: i32) -> (i32, i32) {
    %c0_i32 = arith.constant 0 : i32
    %c0_i32_0 = arith.constant 0 : i32
    %c0_i32_1 = arith.constant 0 : i32
    return %c0_i32, %c0_i32_0 : i32, i32
  }
  func.func @transform_3(%arg0: i32, %arg1: i32) -> (i32, i32) {
    %c0_i32 = arith.constant 0 : i32
    %c0_i32_0 = arith.constant 0 : i32
    %c0_i32_1 = arith.constant 0 : i32
    return %c0_i32, %c0_i32_0 : i32, i32
  }
  func.func @transform_4(%arg0: i32, %arg1: i32) -> (i32, i32) {
    %c0_i32 = arith.constant 0 : i32
    %c0_i32_0 = arith.constant 0 : i32
    %c0_i32_1 = arith.constant 0 : i32
    return %c0_i32, %c0_i32_0 : i32, i32
  }
  func.func @transform_5(%arg0: i32, %arg1: i32) -> (i32, i32) {
    %c2_i32 = arith.constant 2 : i32
    %0 = arith.cmpi eq, %arg0, %c2_i32 : i32
    %c0_i32 = arith.constant 0 : i32
    %1 = arith.select %0, %arg1, %c0_i32 : i32
    %c0_i32_0 = arith.constant 0 : i32
    %c0_i32_1 = arith.constant 0 : i32
    return %1, %c0_i32_0 : i32, i32
  }
  func.func @transform_6(%arg0: i32, %arg1: i32) -> (i32, i32) {
    %c2_i32 = arith.constant 2 : i32
    %0 = arith.cmpi eq, %arg0, %c2_i32 : i32
    %c0_i32 = arith.constant 0 : i32
    %1 = arith.select %0, %arg1, %c0_i32 : i32
    %c0_i32_0 = arith.constant 0 : i32
    %c0_i32_1 = arith.constant 0 : i32
    return %1, %c0_i32_0 : i32, i32
  }
}

</mosaic_0001>

<llo_original>
// kernel: daegc_forward.1
$region0: #{daegc_forward.1}
  #allocation0 [shape = 'u32[]', space=smem, size = 0x4, offset = 0x4, fixed_abs, tag = 'smem constant byte address 0x4 - core index']
  #allocation1 [shape = 'u32[72,128]{1,0:T(1,128)}', space=vmem, size = 0x9000, scoped, tag = 'internal scratch']
  #allocation2 [shape = 'bf16[64,32]{1,0:T(8,128)(2,1)}', space=vmem, size = 0x4000, scoped, tag = 'scratch operand']
  #allocation3 [shape = 'f32[64,32]{1,0:T(8,128)}', space=vmem, size = 0x8000, scoped, tag = 'scratch operand']
  #allocation4 [shape = 'bf16[64,16]{1,0:T(8,128)(2,1)}', space=vmem, size = 0x4000, scoped, tag = 'scratch operand']
  #allocation5 [shape = 'f32[64,16]{1,0:T(8,128)}', space=vmem, size = 0x8000, scoped, tag = 'scratch operand']
  #allocation6 [shape = 'bf16[16,64]{1,0:T(8,128)(2,1)}', space=vmem, size = 0x1000, scoped, tag = 'scratch operand']
  #allocation7 [shape = 'f32[64,1]{1,0:T(8,128)}', space=vmem, size = 0x8000, scoped, tag = 'scratch operand']
  #allocation8 [shape = 'f32[1,64]{1,0:T(1,128)}', space=vmem, size = 0x200, scoped, tag = 'scratch operand']
  %s0 = inlined_call_operand.vmem [shape: bf16[64,32], index: 0, kind: input, shape index: {}]
  %s1 = inlined_call_operand.vmem [shape: f32[64,64], index: 1, kind: input, shape index: {}]
  %s2 = inlined_call_operand.vmem [shape: bf16[32,34], index: 2, kind: input, shape index: {}]
  %s3 = inlined_call_operand.vmem [shape: bf16[32,18], index: 3, kind: input, shape index: {}]
  %s4 = inlined_call_operand.vmem [shape: f32[16,8], index: 4, kind: input, shape index: {}]
  %s5 = inlined_call_operand.hbm [shape: f32[64,64], index: 5, kind: output, shape index: {0}]
  %s6 = inlined_call_operand.vmem [shape: f32[64,128], index: 6, kind: output, shape index: {1}]
  %7 = xla_tuple %s5, %s6
  %s8 = sld [smem:[#allocation0]]
  $region85: #{daegc_forward.1} parent=0
    _
  %s10 = ssub.s32 1, %s8
  %s11 = scalar_select 0, %s10, %s8
  $region1: #{daegc_forward.1} parent=0
    #allocation9 [shape = 'u8[65536]{0}', space=vmem, size = 0x10000, scoped, tag = 'output window, operand 0']
    #allocation10 [shape = 's32[2]{0}', space=sflag, size = 0x8, scoped, tag = 'scoped memory for daegc_forward.1']
    %12 = vsyncpa [#allocation10], 0
    %s13 = scalar_lea.sflag [#allocation10], 1
    %14 = vsyncpa %s13, 0
    loop: start=0, step=1, limit=5
    $region2: #{daegc_forward.1} parent=1 // loop_pre_header
      _
    $region3: #{daegc_forward.1} parent=1 // loop_header
      %s16 = sphi 0, %s20
      %p17 = scmp.ge.s32.totalorder %s16, 5
      %s23 = sphi 0, %s35
      %s24 = sphi 0, %s31
      %s25 = sphi 0, %s23
      %s26 = sphi 0, %s24
      %s27 = sphi 0, %s25
      %s28 = sphi 0, %s26
      %s36 = sphi 0, %s36
      %s38 = sphi 0, %s36
      %s39 = sphi 0, %s38
      %s53 = sphi 0, %s39
      %s63 = sphi 0, %s65
      %s66 = sphi 0, %s63
      %s67 = sphi 0, %s66
      %s83 = sphi 0, %s67
      %s87 = sphi 0, %s87
      %s89 = sphi 0, %s87
      %s90 = sphi 0, %s89
      %s104 = sphi 0, %s90
      %s108 = sphi 0, %s108
      %s110 = sphi 0, %s108
      %s111 = sphi 0, %s110
      %s125 = sphi 0, %s111
      %s129 = sphi 0, %s129
      %s131 = sphi 0, %s129
      %s132 = sphi 0, %s131
      %s146 = sphi 0, %s132
      %s156 = sphi 0, %s158
      %s159 = sphi 0, %s156
      %s160 = sphi 0, %s159
      %s176 = sphi 0, %s160
      %s186 = sphi 0, %s188
      %s189 = sphi 0, %s186
      %s190 = sphi 0, %s189
      %s206 = sphi 0, %s190
    $region4: #{daegc_forward.1} parent=1 // loop_header_branch
      %19 = sbr.rel (%p17) target = $region8
    $region5: #{daegc_forward.1} parent=1 // loop_body
      %s21 = ssub.s32 %s16, 1
      %s22 = ssub.s32 %s16, 2
      %s29 = sadd.s32 1, %s24
      %p30 = scmp.ge.s32.totalorder %s29, 1
      %s31 = scalar_select %p30, 0, %s29
      %s32 = sadd.s32 1, %s23
      %s33 = scalar_select %p30, %s32, %s23
      %p34 = scmp.ge.s32.totalorder %s33, 3
      %s35 = scalar_select %p34, 0, %s33
      %s37 = sadd.s32 %s36, 1
      %p40 = scmp.eq.s32.totalorder %s16, 2
      %p41 = scmp.ne.s32.totalorder %s36, %s38
      %p42 = scmp.eq.s32.totalorder %s16, 0
      %p43 = por %p41, %p42
      %p44 = scmp.ne.s32.totalorder %s36, %s38
      %p45 = scmp.eq.s32.totalorder %s21, 2
      %p46 = por %p44, %p45
      %p47 = scmp.ne.s32.totalorder %s38, %s39
      %p48 = scmp.eq.s32.totalorder %s21, 0
      %p49 = por %p47, %p48
      %p50 = scmp.ne.s32.totalorder %s38, %s39
      %p51 = scmp.eq.s32.totalorder %s22, 2
      %p52 = por %p50, %p51
      %p54 = scmp.ne.s32.totalorder %s39, %s53
      %p55 = scmp.eq.s32.totalorder %s22, 0
      %p56 = por %p54, %p55
      %p57 = scmp.lt.s32.totalorder %s23, 2
      %s58 = scalar_select %p57, %s24, 0
      %p59 = scmp.lt.s32.totalorder %s35, 2
      %s60 = scalar_select %p59, %s31, 0
      %s61 = ssub.s32 %s58, %s60
      %p62 = scmp.eq.s32.totalorder %s61, 0
      %s64 = sadd.s32 %s63, 1
      %s65 = scalar_select %p62, %s63, %s64
      %p68 = pneg %p62
      %p69 = scmp.eq.s32.totalorder %s16, 2
      %p70 = por %p68, %p69
      %p71 = scmp.ne.s32.totalorder %s63, %s66
      %p72 = scmp.eq.s32.totalorder %s16, 0
      %p73 = por %p71, %p72
      %p74 = scmp.ne.s32.totalorder %s63, %s66
      %p75 = scmp.eq.s32.totalorder %s21, 2
      %p76 = por %p74, %p75
      %p77 = scmp.ne.s32.totalorder %s66, %s67
      %p78 = scmp.eq.s32.totalorder %s21, 0
      %p79 = por %p77, %p78
      %p80 = scmp.ne.s32.totalorder %s66, %s67
      %p81 = scmp.eq.s32.totalorder %s22, 2
      %p82 = por %p80, %p81
      %p84 = scmp.ne.s32.totalorder %s67, %s83
      %p85 = scmp.eq.s32.totalorder %s22, 0
      %p86 = por %p84, %p85
      %s88 = sadd.s32 %s87, 1
      %p91 = scmp.eq.s32.totalorder %s16, 2
      %p92 = scmp.ne.s32.totalorder %s87, %s89
      %p93 = scmp.eq.s32.totalorder %s16, 0
      %p94 = por %p92, %p93
      %p95 = scmp.ne.s32.totalorder %s87, %s89
      %p96 = scmp.eq.s32.totalorder %s21, 2
      %p97 = por %p95, %p96
      %p98 = scmp.ne.s32.totalorder %s89, %s90
      %p99 = scmp.eq.s32.totalorder %s21, 0
      %p100 = por %p98, %p99
      %p101 = scmp.ne.s32.totalorder %s89, %s90
      %p102 = scmp.eq.s32.totalorder %s22, 2
      %p103 = por %p101, %p102
      %p105 = scmp.ne.s32.totalorder %s90, %s104
      %p106 = scmp.eq.s32.totalorder %s22, 0
      %p107 = por %p105, %p106
      %s109 = sadd.s32 %s108, 1
      %p112 = scmp.eq.s32.totalorder %s16, 2
      %p113 = scmp.ne.s32.totalorder %s108, %s110
      %p114 = scmp.eq.s32.totalorder %s16, 0
      %p115 = por %p113, %p114
      %p116 = scmp.ne.s32.totalorder %s108, %s110
      %p117 = scmp.eq.s32.totalorder %s21, 2
      %p118 = por %p116, %p117
      %p119 = scmp.ne.s32.totalorder %s110, %s111
      %p120 = scmp.eq.s32.totalorder %s21, 0
      %p121 = por %p119, %p120
      %p122 = scmp.ne.s32.totalorder %s110, %s111
      %p123 = scmp.eq.s32.totalorder %s22, 2
      %p124 = por %p122, %p123
      %p126 = scmp.ne.s32.totalorder %s111, %s125
      %p127 = scmp.eq.s32.totalorder %s22, 0
      %p128 = por %p126, %p127
      %s130 = sadd.s32 %s129, 1
      %p133 = scmp.eq.s32.totalorder %s16, 2
      %p134 = scmp.ne.s32.totalorder %s129, %s131
      %p135 = scmp.eq.s32.totalorder %s16, 0
      %p136 = por %p134, %p135
      %p137 = scmp.ne.s32.totalorder %s129, %s131
      %p138 = scmp.eq.s32.totalorder %s21, 2
      %p139 = por %p137, %p138
      %p140 = scmp.ne.s32.totalorder %s131, %s132
      %p141 = scmp.eq.s32.totalorder %s21, 0
      %p142 = por %p140, %p141
      %p143 = scmp.ne.s32.totalorder %s131, %s132
      %p144 = scmp.eq.s32.totalorder %s22, 2
      %p145 = por %p143, %p144
      %p147 = scmp.ne.s32.totalorder %s132, %s146
      %p148 = scmp.eq.s32.totalorder %s22, 0
      %p149 = por %p147, %p148
      %p150 = scmp.eq.s32.totalorder %s23, 2
      %s151 = scalar_select %p150, %s24, 0
      %p152 = scmp.eq.s32.totalorder %s35, 2
      %s153 = scalar_select %p152, %s31, 0
      %s154 = ssub.s32 %s151, %s153
      %p155 = scmp.eq.s32.totalorder %s154, 0
      %s157 = sadd.s32 %s156, 1
      %s158 = scalar_select %p155, %s156, %s157
      %p161 = pneg %p155
      %p162 = scmp.eq.s32.totalorder %s16, 2
      %p163 = por %p161, %p162
      %p164 = scmp.ne.s32.totalorder %s156, %s159
      %p165 = scmp.eq.s32.totalorder %s16, 0
      %p166 = por %p164, %p165
      %p167 = scmp.ne.s32.totalorder %s156, %s159
      %p168 = scmp.eq.s32.totalorder %s21, 2
      %p169 = por %p167, %p168
      %p170 = scmp.ne.s32.totalorder %s159, %s160
      %p171 = scmp.eq.s32.totalorder %s21, 0
      %p172 = por %p170, %p171
      %p173 = scmp.ne.s32.totalorder %s159, %s160
      %p174 = scmp.eq.s32.totalorder %s22, 2
      %p175 = por %p173, %p174
      %p177 = scmp.ne.s32.totalorder %s160, %s176
      %p178 = scmp.eq.s32.totalorder %s22, 0
      %p179 = por %p177, %p178
      %p180 = scmp.eq.s32.totalorder %s23, 2
      %s181 = scalar_select %p180, %s24, 0
      %p182 = scmp.eq.s32.totalorder %s35, 2
      %s183 = scalar_select %p182, %s31, 0
      %s184 = ssub.s32 %s181, %s183
      %p185 = scmp.eq.s32.totalorder %s184, 0
      %s187 = sadd.s32 %s186, 1
      %s188 = scalar_select %p185, %s186, %s187
      %p191 = pneg %p185
      %p192 = scmp.eq.s32.totalorder %s16, 2
      %p193 = por %p191, %p192
      %p194 = scmp.ne.s32.totalorder %s186, %s189
      %p195 = scmp.eq.s32.totalorder %s16, 0
      %p196 = por %p194, %p195
      %p197 = scmp.ne.s32.totalorder %s186, %s189
      %p198 = scmp.eq.s32.totalorder %s21, 2
      %p199 = por %p197, %p198
      %p200 = scmp.ne.s32.totalorder %s189, %s190
      %p201 = scmp.eq.s32.totalorder %s21, 0
      %p202 = por %p200, %p201
      %p203 = scmp.ne.s32.totalorder %s189, %s190
      %p204 = scmp.eq.s32.totalorder %s22, 2
      %p205 = por %p203, %p204
      %p207 = scmp.ne.s32.totalorder %s190, %s206
      %p208 = scmp.eq.s32.totalorder %s22, 0
      %p209 = por %p207, %p208
      %p210 = scmp.le.s32.totalorder 1, %s16
      %p211 = scmp.lt.s32.totalorder %s16, 4
      %p212 = pnand %p210, %p211
      %p213 = pneg %p212
      // Predicated region
      $region9: #{daegc_forward.1} parent=5 // pred_check
        _
      $region10: #{daegc_forward.1} parent=5 // pred_check_branch
        %215 = sbr.rel (%p212) target = $region12
      $region11: #{daegc_forward.1} parent=5 // pred_region
        %s216 = ssub.s32 %s16, 1
        // Predicated region
        $region13: #{daegc_forward.1} parent=11 // pred_check
          %p217 = pneg %p49
        $region14: #{daegc_forward.1} parent=11 // pred_check_branch
          %219 = sbr.rel (%p217) target = $region16
        $region15: #{daegc_forward.1} parent=11 // pred_region
          _
        $region16: #{daegc_forward.1} parent=11 // pred_fallthru
          _
        // Predicated region
        $region17: #{daegc_forward.1} parent=11 // pred_check
          %p220 = pneg %p100
        $region18: #{daegc_forward.1} parent=11 // pred_check_branch
          %222 = sbr.rel (%p220) target = $region20
        $region19: #{daegc_forward.1} parent=11 // pred_region
          _
        $region20: #{daegc_forward.1} parent=11 // pred_fallthru
          _
        // Predicated region
        $region21: #{daegc_forward.1} parent=11 // pred_check
          %p223 = pneg %p121
        $region22: #{daegc_forward.1} parent=11 // pred_check_branch
          %225 = sbr.rel (%p223) target = $region24
        $region23: #{daegc_forward.1} parent=11 // pred_region
          _
        $region24: #{daegc_forward.1} parent=11 // pred_fallthru
          _
        // Predicated region
        $region25: #{daegc_forward.1} parent=11 // pred_check
          %p226 = pneg %p142
        $region26: #{daegc_forward.1} parent=11 // pred_check_branch
          %228 = sbr.rel (%p226) target = $region28
        $region27: #{daegc_forward.1} parent=11 // pred_region
          _
        $region28: #{daegc_forward.1} parent=11 // pred_fallthru
          _
      $region12: #{daegc_forward.1} parent=5 // pred_fallthru
        _
      %p229 = scmp.lt.s32.totalorder %s16, 3
      // Predicated region
      $region29: #{daegc_forward.1} parent=5 // pred_check
        %p230 = pneg %p229
      $region30: #{daegc_forward.1} parent=5 // pred_check_branch
        %232 = sbr.rel (%p230) target = $region32
      $region31: #{daegc_forward.1} parent=5 // pred_region
        // Predicated region
        $region33: #{daegc_forward.1} parent=31 // pred_check
          %p233 = pneg %p73
        $region34: #{daegc_forward.1} parent=31 // pred_check_branch
          %235 = sbr.rel (%p233) target = $region36
        $region35: #{daegc_forward.1} parent=31 // pred_region
          %p236 = scmp.lt.s32.totalorder %s23, 2
          %s237 = scalar_select %p236, %s24, 0
          %s238 = smul.u32 8, %s237
          %p239 = scmp.lt.s32.totalorder %s238, 7
          %s240 = scalar_select %p239, %s238, 7
          %s241 = smul.addr %s240, 8
          %s242 = scalar_lea.vmem %s1, %s241
          %p243 = scmp.lt.s32.totalorder %s23, 2
          %s244 = scalar_select %p243, %s24, 0
          %s245 = smul.u32 8, %s244
        $region36: #{daegc_forward.1} parent=31 // pred_fallthru
          _
      $region32: #{daegc_forward.1} parent=5 // pred_fallthru
        _
      %p246 = scmp.le.s32.totalorder 1, %s16
      %p247 = scmp.lt.s32.totalorder %s16, 4
      %p248 = pnand %p246, %p247
      %p249 = pneg %p248
      // Predicated region
      $region37: #{daegc_forward.1} parent=5 // pred_check
        _
      $region38: #{daegc_forward.1} parent=5 // pred_check_branch
        %251 = sbr.rel (%p248) target = $region40
      $region39: #{daegc_forward.1} parent=5 // pred_region
        %s252 = ssub.s32 %s16, 1
        %p253 = pneg %p49
        %p254 = pneg %p46
        %p255 = scmp.lt.s32.totalorder %s25, 2
        %s256 = scalar_select %p255, %s26, 0
        %s257 = smul.u32 8, %s256
        %p258 = scmp.lt.s32.totalorder %s257, 7
        %s259 = scalar_select %p258, %s257, 7
        %s260 = smul.addr %s259, 8
        %s261 = scalar_lea.vmem %s1, %s260
        %p262 = pneg %p79
        %p263 = pneg %p76
        %p264 = pneg %p100
        %p265 = pneg %p97
        %p266 = pneg %p121
        %p267 = pneg %p118
        %p268 = pneg %p142
        %p269 = pneg %p139
        %p270 = pneg %p172
        %p271 = pneg %p169
        %s272 = sand.u32 %s159, 1
        %s273 = scalar_lea.sflag [#allocation10], %s272
        %s274 = sand.u32 %s159, 1
        %s275 = smul.addr %s274, 64
        %s276 = scalar_lea.vmem [#allocation9], %s275
        %p277 = pneg %p202
        %p278 = pneg %p199
        %p279 = scmp.eq.s32.totalorder %s25, 2
        %s280 = scalar_select %p279, %s26, 0
        %s281 = smul.u32 8, %s280
        %p282 = scmp.lt.s32.totalorder %s281, 7
        %s283 = scalar_select %p282, %s281, 7
        %s284 = smul.addr %s283, 8
        %s285 = scalar_lea.vmem %s6, %s284
        %p286 = scmp.lt.s32.totalorder %s25, 2
        %s287 = scalar_select %p286, %s26, 0
        %s288 = smul.u32 8, %s287
        %p289 = scmp.lt.s32.totalorder %s288, 7
        %s290 = scalar_select %p289, %s288, 7
        %s291 = smul.addr %s290, 8
        %s292 = scalar_lea.vmem %s1, %s291
        %p293 = scmp.lt.s32.totalorder %s25, 2
        %s294 = scalar_select %p293, %s26, 0
        %s295 = smul.u32 8, %s294
        %p296 = scmp.eq.s32.totalorder %s25, 2
        %s297 = scalar_select %p296, %s26, 0
        %s298 = smul.u32 8, %s297
        %p299 = scmp.eq.s32.totalorder %s25, 2
        %s300 = scalar_select %p299, %s26, 0
        %s301 = smul.u32 8, %s300
        %p302 = scmp.lt.s32.totalorder %s301, 7
        %s303 = scalar_select %p302, %s301, 7
        %s304 = smul.addr %s303, 8
        %s305 = scalar_lea.vmem %s6, %s304
        %p306 = scmp.eq.s32.totalorder %s25, 2
        %s307 = scalar_select %p306, %s26, 0
        %s308 = smul.u32 8, %s307
        %s310 = smul.u32 %s26, 64
        %p311 = scmp.eq.s32.totalorder %s25, 0
        // Predicated region
        $region41: #{daegc_forward.1} parent=39 // pred_check
          %p312 = pneg %p311
        $region42: #{daegc_forward.1} parent=39 // pred_check_branch
          %314 = sbr.rel (%p312) target = $region44
        $region43: #{daegc_forward.1} parent=39 // pred_region
          %p315 = scmp.eq.s32.totalorder %s26, 0
          // Predicated region
          $region45: #{daegc_forward.1} parent=43 // pred_check
            %p316 = pneg %p315
          $region46: #{daegc_forward.1} parent=43 // pred_check_branch
            %318 = sbr.rel (%p316) target = $region48
          $region47: #{daegc_forward.1} parent=43 // pred_region
            %v319 = vld [vmem:[%s0] sm:$0xf]
            %v320 = vld [vmem:[%s0 + $0x4] sm:$0xf]
            %v321 = vld [vmem:[%s0 + $0x8] sm:$0xf]
            %v322 = vld [vmem:[%s0 + $0xc] sm:$0xf]
            %v323 = vld [vmem:[%s0 + $0x10] sm:$0xf]
            %v324 = vld [vmem:[%s0 + $0x14] sm:$0xf]
            %v325 = vld [vmem:[%s0 + $0x18] sm:$0xf]
            %v326 = vld [vmem:[%s0 + $0x1c] sm:$0xf]
            %v327 = vld [vmem:[%s2] sm:$0xf]
            %v328 = vld [vmem:[%s2 + $0x4] sm:$0xf]
            %v329 = vld [vmem:[%s2 + $0x8] sm:$0xf]
            %v330 = vld [vmem:[%s2 + $0xc] sm:$0xf]
            %v339 = vunpack.c.l.b16 %v319
            %v340 = vunpack.c.l.b16 %v320
            %v341 = vunpack.c.l.b16 %v321
            %v342 = vunpack.c.l.b16 %v322
            %v343 = vunpack.c.l.b16 %v323
            %v344 = vunpack.c.l.b16 %v324
            %v345 = vunpack.c.l.b16 %v325
            %v346 = vunpack.c.l.b16 %v326
            %v347 = vpack.c.b16 %v340, %v339
            %v348 = vpack.c.b16 %v342, %v341
            %v349 = vpack.c.b16 %v344, %v343
            %v350 = vpack.c.b16 %v346, %v345
            %v355 = vunpack.c.l.b16 %v327
            %v356 = vunpack.c.l.b16 %v328
            %v357 = vunpack.c.l.b16 %v329
            %v358 = vunpack.c.l.b16 %v330
            %v359 = vpack.c.b16 %v356, %v355
            %v360 = vpack.c.b16 %v358, %v357
            %vm363 = vcmask 261120
            %v365 = vsel %vm363, %v347, 0
            %v368 = vsel %vm363, %v348, 0
            %v371 = vsel %vm363, %v349, 0
            %v374 = vsel %vm363, %v350, 0
            %376 = vmatpush.bf16.msra.mxu0 0
            %377 = vmatpush.bf16.msra.mxu0 0
            %378 = vmatpush.bf16.msra.mxu0 0
            %379 = vmatpush.bf16.msra.mxu0 0
            %380 = vmatpush.bf16.msra.mxu0 0
            %381 = vmatpush.bf16.msra.mxu0 0
            %382 = vmatpush.bf16.msra.mxu0 %v360
            %383 = vmatpush.bf16.msra.mxu0 %v359
            %384 = vmatmul.bf16.gmra.mxu0 %v365
            %v385 = vpop.f32.mrf.mxu0
            %v386 = vadd.f32 0.0, %v385
            %v387 = vpop.f32.mrf.mxu0
            %v388 = vadd.f32 0.0, %v387
            %389 = vmatmul.bf16.gmra.mxu0 %v368
            %v390 = vpop.f32.mrf.mxu0
            %v391 = vadd.f32 0.0, %v390
            %v392 = vpop.f32.mrf.mxu0
            %v393 = vadd.f32 0.0, %v392
            %394 = vmatmul.bf16.gmra.mxu0 %v371
            %v395 = vpop.f32.mrf.mxu0
            %v396 = vadd.f32 0.0, %v395
            %v397 = vpop.f32.mrf.mxu0
            %v398 = vadd.f32 0.0, %v397
            %399 = vmatmul.bf16.gmra.mxu0 %v374
            %v400 = vpop.f32.mrf.mxu0
            %v401 = vadd.f32 0.0, %v400
            %v402 = vpop.f32.mrf.mxu0
            %v403 = vadd.f32 0.0, %v402
            %404 = vdwg.mxu0
            %v405 = vpack.c.bf16 %v386, %v386
            %v406 = vpack.c.bf16 %v388, %v388
            %v407 = vpack.c.bf16 %v391, %v391
            %v408 = vpack.c.bf16 %v393, %v393
            %v409 = vpack.c.bf16 %v396, %v396
            %v410 = vpack.c.bf16 %v398, %v398
            %v411 = vpack.c.bf16 %v401, %v401
            %v412 = vpack.c.bf16 %v403, %v403
            %vm413 = vcmask 257024
            %414 = vst.msk [vmem:[#allocation2] sm:$0xf] %vm413, %v405
            %415 = vst.msk [vmem:[#allocation2 + $0x4] sm:$0xf] %vm413, %v406
            %416 = vst.msk [vmem:[#allocation2 + $0x8] sm:$0xf] %vm413, %v407
            %417 = vst.msk [vmem:[#allocation2 + $0xc] sm:$0xf] %vm413, %v408
            %418 = vst.msk [vmem:[#allocation2 + $0x10] sm:$0xf] %vm413, %v409
            %419 = vst.msk [vmem:[#allocation2 + $0x14] sm:$0xf] %vm413, %v410
            %420 = vst.msk [vmem:[#allocation2 + $0x18] sm:$0xf] %vm413, %v411
            %421 = vst.msk [vmem:[#allocation2 + $0x1c] sm:$0xf] %vm413, %v412
            %430 = vrot.lane.b32.xlu0 %v386, 96
            %v431 = vpop.permute.xlu0 %430
            %432 = vrot.lane.b32.xlu0 %v388, 96
            %v433 = vpop.permute.xlu0 %432
            %434 = vrot.lane.b32.xlu0 %v391, 96
            %v435 = vpop.permute.xlu0 %434
            %436 = vrot.lane.b32.xlu0 %v393, 96
            %v437 = vpop.permute.xlu0 %436
            %438 = vrot.lane.b32.xlu0 %v396, 96
            %v439 = vpop.permute.xlu0 %438
            %440 = vrot.lane.b32.xlu0 %v398, 96
            %v441 = vpop.permute.xlu0 %440
            %442 = vrot.lane.b32.xlu0 %v401, 96
            %v443 = vpop.permute.xlu0 %442
            %444 = vrot.lane.b32.xlu0 %v403, 96
            %v445 = vpop.permute.xlu0 %444
            %vm454 = vcmask 7168
            %455 = vst.msk [vmem:[#allocation7] sm:$0xff] %vm454, %v431
            %456 = vst.msk [vmem:[#allocation7 + $0x8] sm:$0xff] %vm454, %v433
            %457 = vst.msk [vmem:[#allocation7 + $0x10] sm:$0xff] %vm454, %v435
            %458 = vst.msk [vmem:[#allocation7 + $0x18] sm:$0xff] %vm454, %v437
            %459 = vst.msk [vmem:[#allocation7 + $0x20] sm:$0xff] %vm454, %v439
            %460 = vst.msk [vmem:[#allocation7 + $0x28] sm:$0xff] %vm454, %v441
            %461 = vst.msk [vmem:[#allocation7 + $0x30] sm:$0xff] %vm454, %v443
            %462 = vst.msk [vmem:[#allocation7 + $0x38] sm:$0xff] %vm454, %v445
            %463 = vrot.lane.b32.xlu0 %v386, 95
            %v464 = vpop.permute.xlu0 %463
            %465 = vrot.lane.b32.xlu0 %v388, 95
            %v466 = vpop.permute.xlu0 %465
            %467 = vrot.lane.b32.xlu0 %v391, 95
            %v468 = vpop.permute.xlu0 %467
            %469 = vrot.lane.b32.xlu0 %v393, 95
            %v470 = vpop.permute.xlu0 %469
            %471 = vrot.lane.b32.xlu0 %v396, 95
            %v472 = vpop.permute.xlu0 %471
            %473 = vrot.lane.b32.xlu0 %v398, 95
            %v474 = vpop.permute.xlu0 %473
            %475 = vrot.lane.b32.xlu0 %v401, 95
            %v476 = vpop.permute.xlu0 %475
            %477 = vrot.lane.b32.xlu0 %v403, 95
            %v478 = vpop.permute.xlu0 %477
            %487 = vxpose.xlu0.b32.start [1/16] %v464, 128
            %488 = vxpose.xlu0.b32.cont [2/16] %v466, 128
            %489 = vxpose.xlu0.b32.cont [3/16] %v468, 128
            %490 = vxpose.xlu0.b32.cont [4/16] %v470, 128
            %491 = vxpose.xlu0.b32.cont [5/16] %v472, 128
            %492 = vxpose.xlu0.b32.cont [6/16] %v474, 128
            %493 = vxpose.xlu0.b32.cont [7/16] %v476, 128
            %494 = vxpose.xlu0.b32.cont [8/16] %v478, 128
            %495 = vxpose.xlu0.b32.cont [9/16] 0.0, 128
            %496 = vxpose.xlu0.b32.cont [10/16] 0.0, 128
            %497 = vxpose.xlu0.b32.cont [11/16] 0.0, 128
            %498 = vxpose.xlu0.b32.cont [12/16] 0.0, 128
            %499 = vxpose.xlu0.b32.cont [13/16] 0.0, 128
            %500 = vxpose.xlu0.b32.cont [14/16] 0.0, 128
            %501 = vxpose.xlu0.b32.cont [15/16] 0.0, 128
            %502 = vxpose.xlu0.b32.end [16/16] 0.0, 128
            %v503 = vpop.trf.xlu0
            %v504 = vpop.trf.xlu0
            %v505 = vpop.trf.xlu0
            %v506 = vpop.trf.xlu0
            %v507 = vpop.trf.xlu0
            %v508 = vpop.trf.xlu0
            %v509 = vpop.trf.xlu0
            %v510 = vpop.trf.xlu0
            %v511 = vpop.trf.xlu0
            %v512 = vpop.trf.xlu0
            %v513 = vpop.trf.xlu0
            %v514 = vpop.trf.xlu0
            %v515 = vpop.trf.xlu0
            %v516 = vpop.trf.xlu0
            %v517 = vpop.trf.xlu0
            %v518 = vpop.trf.xlu0
            %vm519 = vcmask 516096
            %520 = vst.msk [vmem:[#allocation8] sm:$0x1] %vm519, %v503
          $region48: #{daegc_forward.1} parent=43 // pred_fallthru
            _
          %v521 = vld [vmem:[%s292] sm:$0xff]
          %v522 = vld [vmem:[%s292 + $0x8] sm:$0xff]
          %v523 = vld [vmem:[%s292 + $0x10] sm:$0xff]
          %v524 = vld [vmem:[%s292 + $0x18] sm:$0xff]
          %v525 = vld [vmem:[%s292 + $0x20] sm:$0xff]
          %v526 = vld [vmem:[%s292 + $0x28] sm:$0xff]
          %v527 = vld [vmem:[%s292 + $0x30] sm:$0xff]
          %v528 = vld [vmem:[%s292 + $0x38] sm:$0xff]
          %vm529 = vcmp.ne.f32.partialorder %v521, -inf
          %vm530 = vcmp.ne.f32.partialorder %v522, -inf
          %vm531 = vcmp.ne.f32.partialorder %v523, -inf
          %vm532 = vcmp.ne.f32.partialorder %v524, -inf
          %vm533 = vcmp.ne.f32.partialorder %v525, -inf
          %vm534 = vcmp.ne.f32.partialorder %v526, -inf
          %vm535 = vcmp.ne.f32.partialorder %v527, -inf
          %vm536 = vcmp.ne.f32.partialorder %v528, -inf
          %v537 = vsel %vm529, %v521, 0.0
          %v538 = vsel %vm530, %v522, 0.0
          %v539 = vsel %vm531, %v523, 0.0
          %v540 = vsel %vm532, %v524, 0.0
          %v541 = vsel %vm533, %v525, 0.0
          %v542 = vsel %vm534, %v526, 0.0
          %v543 = vsel %vm535, %v527, 0.0
          %v544 = vsel %vm536, %v528, 0.0
          %s545 = scalar_lea.vmem [#allocation7], %s310
          %v546 = vld [vmem:[%s545] sm:$0xff]
          %v547 = vld [vmem:[%s545 + $0x8] sm:$0xff]
          %v548 = vld [vmem:[%s545 + $0x10] sm:$0xff]
          %v549 = vld [vmem:[%s545 + $0x18] sm:$0xff]
          %v550 = vld [vmem:[%s545 + $0x20] sm:$0xff]
          %v551 = vld [vmem:[%s545 + $0x28] sm:$0xff]
          %v552 = vld [vmem:[%s545 + $0x30] sm:$0xff]
          %v553 = vld [vmem:[%s545 + $0x38] sm:$0xff]
          %v554 = vld [vmem:[#allocation8] sm:$0x1]
          %556 = vset.pattern.permute.xlu0 0
          %557 = vperm.xlu0 %556, %v546
          %v558 = vpop.permute.xlu0 %557
          %561 = vset.pattern.permute.xlu0 0
          %562 = vperm.xlu0 %561, %v547
          %v563 = vpop.permute.xlu0 %562
          %566 = vset.pattern.permute.xlu0 0
          %567 = vperm.xlu0 %566, %v548
          %v568 = vpop.permute.xlu0 %567
          %571 = vset.pattern.permute.xlu0 0
          %572 = vperm.xlu0 %571, %v549
          %v573 = vpop.permute.xlu0 %572
          %576 = vset.pattern.permute.xlu0 0
          %577 = vperm.xlu0 %576, %v550
          %v578 = vpop.permute.xlu0 %577
          %581 = vset.pattern.permute.xlu0 0
          %582 = vperm.xlu0 %581, %v551
          %v583 = vpop.permute.xlu0 %582
          %586 = vset.pattern.permute.xlu0 0
          %587 = vperm.xlu0 %586, %v552
          %v588 = vpop.permute.xlu0 %587
          %591 = vset.pattern.permute.xlu0 0
          %592 = vperm.xlu0 %591, %v553
          %v593 = vpop.permute.xlu0 %592
          %v596 = vperm.slane %v554, 0
          %v598 = vadd.f32 %v558, %v596
          %v599 = vadd.f32 %v563, %v596
          %v600 = vadd.f32 %v568, %v596
          %v601 = vadd.f32 %v573, %v596
          %v602 = vadd.f32 %v578, %v596
          %v603 = vadd.f32 %v583, %v596
          %v604 = vadd.f32 %v588, %v596
          %v605 = vadd.f32 %v593, %v596
          %v606 = vmul.f32 %v598, %v537
          %v607 = vmul.f32 %v599, %v538
          %v608 = vmul.f32 %v600, %v539
          %v609 = vmul.f32 %v601, %v540
          %v610 = vmul.f32 %v602, %v541
          %v611 = vmul.f32 %v603, %v542
          %v612 = vmul.f32 %v604, %v543
          %v613 = vmul.f32 %v605, %v544
          %vm614 = vcmp.gt.f32.partialorder %v606, 0.0
          %vm615 = vcmp.gt.f32.partialorder %v607, 0.0
          %vm616 = vcmp.gt.f32.partialorder %v608, 0.0
          %vm617 = vcmp.gt.f32.partialorder %v609, 0.0
          %vm618 = vcmp.gt.f32.partialorder %v610, 0.0
          %vm619 = vcmp.gt.f32.partialorder %v611, 0.0
          %vm620 = vcmp.gt.f32.partialorder %v612, 0.0
          %vm621 = vcmp.gt.f32.partialorder %v613, 0.0
          %v622 = vmul.f32 %v606, 0.2
          %v623 = vmul.f32 %v607, 0.2
          %v624 = vmul.f32 %v608, 0.2
          %v625 = vmul.f32 %v609, 0.2
          %v626 = vmul.f32 %v610, 0.2
          %v627 = vmul.f32 %v611, 0.2
          %v628 = vmul.f32 %v612, 0.2
          %v629 = vmul.f32 %v613, 0.2
          %v630 = vsel %vm614, %v606, %v622
          %v631 = vsel %vm615, %v607, %v623
          %v632 = vsel %vm616, %v608, %v624
          %v633 = vsel %vm617, %v609, %v625
          %v634 = vsel %vm618, %v610, %v626
          %v635 = vsel %vm619, %v611, %v627
          %v636 = vsel %vm620, %v612, %v628
          %v637 = vsel %vm621, %v613, %v629
          %v638 = vsel %vm529, %v630, -9e+15
          %v639 = vsel %vm530, %v631, -9e+15
          %v640 = vsel %vm531, %v632, -9e+15
          %v641 = vsel %vm532, %v633, -9e+15
          %v642 = vsel %vm533, %v634, -9e+15
          %v643 = vsel %vm534, %v635, -9e+15
          %v644 = vsel %vm535, %v636, -9e+15
          %v645 = vsel %vm536, %v637, -9e+15
          %vm646 = vcmask 523264
          %v647 = vsel %vm646, %v638, -inf
          %648 = vmax.xlane.f32.xlu0 %v647
          %v649 = vpop.xlane.xlu0 %648
          %v650 = vsel %vm646, %v639, -inf
          %651 = vmax.xlane.f32.xlu0 %v650
          %v652 = vpop.xlane.xlu0 %651
          %v653 = vsel %vm646, %v640, -inf
          %654 = vmax.xlane.f32.xlu0 %v653
          %v655 = vpop.xlane.xlu0 %654
          %v656 = vsel %vm646, %v641, -inf
          %657 = vmax.xlane.f32.xlu0 %v656
          %v658 = vpop.xlane.xlu0 %657
          %v659 = vsel %vm646, %v642, -inf
          %660 = vmax.xlane.f32.xlu0 %v659
          %v661 = vpop.xlane.xlu0 %660
          %v662 = vsel %vm646, %v643, -inf
          %663 = vmax.xlane.f32.xlu0 %v662
          %v664 = vpop.xlane.xlu0 %663
          %v665 = vsel %vm646, %v644, -inf
          %666 = vmax.xlane.f32.xlu0 %v665
          %v667 = vpop.xlane.xlu0 %666
          %v668 = vsel %vm646, %v645, -inf
          %669 = vmax.xlane.f32.xlu0 %v668
          %v670 = vpop.xlane.xlu0 %669
          %v671 = vsub.f32 %v638, %v649
          %v672 = vsub.f32 %v639, %v652
          %v673 = vsub.f32 %v640, %v655
          %v674 = vsub.f32 %v641, %v658
          %v675 = vsub.f32 %v642, %v661
          %v676 = vsub.f32 %v643, %v664
          %v677 = vsub.f32 %v644, %v667
          %v678 = vsub.f32 %v645, %v670
          %v679 = vmul.f32 %v671, 1.442695
          %v680 = vpow.pop %v679
          %v681 = vmul.f32 %v672, 1.442695
          %v682 = vpow.pop %v681
          %v683 = vmul.f32 %v673, 1.442695
          %v684 = vpow.pop %v683
          %v685 = vmul.f32 %v674, 1.442695
          %v686 = vpow.pop %v685
          %v687 = vmul.f32 %v675, 1.442695
          %v688 = vpow.pop %v687
          %v689 = vmul.f32 %v676, 1.442695
          %v690 = vpow.pop %v689
          %v691 = vmul.f32 %v677, 1.442695
          %v692 = vpow.pop %v691
          %v693 = vmul.f32 %v678, 1.442695
          %v694 = vpow.pop %v693
          %v695 = vsel %vm646, %v680, 0.0
          %696 = vadd.xlane.f32.xlu0 %v695
          %v697 = vpop.xlane.xlu0 %696
          %v698 = vsel %vm646, %v682, 0.0
          %699 = vadd.xlane.f32.xlu0 %v698
          %v700 = vpop.xlane.xlu0 %699
          %v701 = vsel %vm646, %v684, 0.0
          %702 = vadd.xlane.f32.xlu0 %v701
          %v703 = vpop.xlane.xlu0 %702
          %v704 = vsel %vm646, %v686, 0.0
          %705 = vadd.xlane.f32.xlu0 %v704
          %v706 = vpop.xlane.xlu0 %705
          %v707 = vsel %vm646, %v688, 0.0
          %708 = vadd.xlane.f32.xlu0 %v707
          %v709 = vpop.xlane.xlu0 %708
          %v710 = vsel %vm646, %v690, 0.0
          %711 = vadd.xlane.f32.xlu0 %v710
          %v712 = vpop.xlane.xlu0 %711
          %v713 = vsel %vm646, %v692, 0.0
          %714 = vadd.xlane.f32.xlu0 %v713
          %v715 = vpop.xlane.xlu0 %714
          %v716 = vsel %vm646, %v694, 0.0
          %717 = vadd.xlane.f32.xlu0 %v716
          %v718 = vpop.xlane.xlu0 %717
          %v719 = vrcp.pop %v697
          %v720 = vrcp.pop %v700
          %v721 = vrcp.pop %v703
          %v722 = vrcp.pop %v706
          %v723 = vrcp.pop %v709
          %v724 = vrcp.pop %v712
          %v725 = vrcp.pop %v715
          %v726 = vrcp.pop %v718
          %v727 = vmul.f32 %v680, %v719
          %v728 = vmul.f32 %v682, %v720
          %v729 = vmul.f32 %v684, %v721
          %v730 = vmul.f32 %v686, %v722
          %v731 = vmul.f32 %v688, %v723
          %v732 = vmul.f32 %v690, %v724
          %v733 = vmul.f32 %v692, %v725
          %v734 = vmul.f32 %v694, %v726
          %v735 = vpack.c.bf16 %v728, %v727
          %v736 = vpack.c.bf16 %v730, %v729
          %v737 = vpack.c.bf16 %v732, %v731
          %v738 = vpack.c.bf16 %v734, %v733
          %v739 = vld [vmem:[#allocation2] sm:$0xf]
          %v740 = vld [vmem:[#allocation2 + $0x4] sm:$0xf]
          %v741 = vld [vmem:[#allocation2 + $0x8] sm:$0xf]
          %v742 = vld [vmem:[#allocation2 + $0xc] sm:$0xf]
          %v743 = vld [vmem:[#allocation2 + $0x10] sm:$0xf]
          %v744 = vld [vmem:[#allocation2 + $0x14] sm:$0xf]
          %v745 = vld [vmem:[#allocation2 + $0x18] sm:$0xf]
          %v746 = vld [vmem:[#allocation2 + $0x1c] sm:$0xf]
          %v755 = vunpack.c.l.b16 %v739
          %v756 = vunpack.c.l.b16 %v740
          %v757 = vunpack.c.l.b16 %v741
          %v758 = vunpack.c.l.b16 %v742
          %v759 = vunpack.c.l.b16 %v743
          %v760 = vunpack.c.l.b16 %v744
          %v761 = vunpack.c.l.b16 %v745
          %v762 = vunpack.c.l.b16 %v746
          %v763 = vpack.c.b16 %v756, %v755
          %v764 = vpack.c.b16 %v758, %v757
          %v765 = vpack.c.b16 %v760, %v759
          %v766 = vpack.c.b16 %v762, %v761
          %v772 = vsel %vm646, %v735, 0
          %v775 = vsel %vm646, %v736, 0
          %v778 = vsel %vm646, %v737, 0
          %v781 = vsel %vm646, %v738, 0
          %783 = vmatpush.bf16.msra.mxu0 0
          %784 = vmatpush.bf16.msra.mxu0 0
          %785 = vmatpush.bf16.msra.mxu0 0
          %786 = vmatpush.bf16.msra.mxu0 0
          %787 = vmatpush.bf16.msra.mxu0 %v766
          %788 = vmatpush.bf16.msra.mxu0 %v765
          %789 = vmatpush.bf16.msra.mxu0 %v764
          %790 = vmatpush.bf16.msra.mxu0 %v763
          %791 = vmatmul.bf16.gmra.mxu0 %v772
          %v792 = vpop.f32.mrf.mxu0
          %v793 = vadd.f32 0.0, %v792
          %v794 = vpop.f32.mrf.mxu0
          %v795 = vadd.f32 0.0, %v794
          %796 = vmatmul.bf16.gmra.mxu0 %v775
          %v797 = vpop.f32.mrf.mxu0
          %v798 = vadd.f32 0.0, %v797
          %v799 = vpop.f32.mrf.mxu0
          %v800 = vadd.f32 0.0, %v799
          %801 = vmatmul.bf16.gmra.mxu0 %v778
          %v802 = vpop.f32.mrf.mxu0
          %v803 = vadd.f32 0.0, %v802
          %v804 = vpop.f32.mrf.mxu0
          %v805 = vadd.f32 0.0, %v804
          %806 = vmatmul.bf16.gmra.mxu0 %v781
          %v807 = vpop.f32.mrf.mxu0
          %v808 = vadd.f32 0.0, %v807
          %v809 = vpop.f32.mrf.mxu0
          %v810 = vadd.f32 0.0, %v809
          %811 = vdwg.mxu0
          %vm812 = vcmp.gt.f32.partialorder %v793, 0.0
          %vm813 = vcmp.gt.f32.partialorder %v795, 0.0
          %vm814 = vcmp.gt.f32.partialorder %v798, 0.0
          %vm815 = vcmp.gt.f32.partialorder %v800, 0.0
          %vm816 = vcmp.gt.f32.partialorder %v803, 0.0
          %vm817 = vcmp.gt.f32.partialorder %v805, 0.0
          %vm818 = vcmp.gt.f32.partialorder %v808, 0.0
          %vm819 = vcmp.gt.f32.partialorder %v810, 0.0
          %v820 = vmul.f32 %v793, 1.442695
          %v821 = vpow.pop %v820
          %v822 = vmul.f32 %v795, 1.442695
          %v823 = vpow.pop %v822
          %v824 = vmul.f32 %v798, 1.442695
          %v825 = vpow.pop %v824
          %v826 = vmul.f32 %v800, 1.442695
          %v827 = vpow.pop %v826
          %v828 = vmul.f32 %v803, 1.442695
          %v829 = vpow.pop %v828
          %v830 = vmul.f32 %v805, 1.442695
          %v831 = vpow.pop %v830
          %v832 = vmul.f32 %v808, 1.442695
          %v833 = vpow.pop %v832
          %v834 = vmul.f32 %v810, 1.442695
          %v835 = vpow.pop %v834
          %v836 = vsub.f32 %v821, 1.0
          %v837 = vsub.f32 %v823, 1.0
          %v838 = vsub.f32 %v825, 1.0
          %v839 = vsub.f32 %v827, 1.0
          %v840 = vsub.f32 %v829, 1.0
          %v841 = vsub.f32 %v831, 1.0
          %v842 = vsub.f32 %v833, 1.0
          %v843 = vsub.f32 %v835, 1.0
          %v844 = vsel %vm812, %v793, %v836
          %v845 = vsel %vm813, %v795, %v837
          %v846 = vsel %vm814, %v798, %v838
          %v847 = vsel %vm815, %v800, %v839
          %v848 = vsel %vm816, %v803, %v840
          %v849 = vsel %vm817, %v805, %v841
          %v850 = vsel %vm818, %v808, %v842
          %v851 = vsel %vm819, %v810, %v843
          %s852 = scalar_lea.vmem [#allocation3], %s310
          %vm853 = vcmask 261120
          %854 = vst.msk [vmem:[%s852] sm:$0xff] %vm853, %v844
          %855 = vst.msk [vmem:[%s852 + $0x8] sm:$0xff] %vm853, %v845
          %856 = vst.msk [vmem:[%s852 + $0x10] sm:$0xff] %vm853, %v846
          %857 = vst.msk [vmem:[%s852 + $0x18] sm:$0xff] %vm853, %v847
          %858 = vst.msk [vmem:[%s852 + $0x20] sm:$0xff] %vm853, %v848
          %859 = vst.msk [vmem:[%s852 + $0x28] sm:$0xff] %vm853, %v849
          %860 = vst.msk [vmem:[%s852 + $0x30] sm:$0xff] %vm853, %v850
          %861 = vst.msk [vmem:[%s852 + $0x38] sm:$0xff] %vm853, %v851
        $region44: #{daegc_forward.1} parent=39 // pred_fallthru
          _
        %p862 = scmp.eq.s32.totalorder %s25, 1
        // Predicated region
        $region49: #{daegc_forward.1} parent=39 // pred_check
          %p863 = pneg %p862
        $region50: #{daegc_forward.1} parent=39 // pred_check_branch
          %865 = sbr.rel (%p863) target = $region52
        $region51: #{daegc_forward.1} parent=39 // pred_region
          %p866 = scmp.eq.s32.totalorder %s26, 0
          // Predicated region
          $region53: #{daegc_forward.1} parent=51 // pred_check
            %p867 = pneg %p866
          $region54: #{daegc_forward.1} parent=51 // pred_check_branch
            %869 = sbr.rel (%p867) target = $region56
          $region55: #{daegc_forward.1} parent=51 // pred_region
            %v870 = vld [vmem:[#allocation3] sm:$0xff]
            %v871 = vld [vmem:[#allocation3 + $0x8] sm:$0xff]
            %v872 = vld [vmem:[#allocation3 + $0x10] sm:$0xff]
            %v873 = vld [vmem:[#allocation3 + $0x18] sm:$0xff]
            %v874 = vld [vmem:[#allocation3 + $0x20] sm:$0xff]
            %v875 = vld [vmem:[#allocation3 + $0x28] sm:$0xff]
            %v876 = vld [vmem:[#allocation3 + $0x30] sm:$0xff]
            %v877 = vld [vmem:[#allocation3 + $0x38] sm:$0xff]
            %v878 = vpack.c.bf16 %v871, %v870
            %v879 = vpack.c.bf16 %v873, %v872
            %v880 = vpack.c.bf16 %v875, %v874
            %v881 = vpack.c.bf16 %v877, %v876
            %v882 = vld [vmem:[%s3] sm:$0xf]
            %v883 = vld [vmem:[%s3 + $0x4] sm:$0xf]
            %v884 = vld [vmem:[%s3 + $0x8] sm:$0xf]
            %v885 = vld [vmem:[%s3 + $0xc] sm:$0xf]
            %v890 = vunpack.c.l.b16 %v882
            %v891 = vunpack.c.l.b16 %v883
            %v892 = vunpack.c.l.b16 %v884
            %v893 = vunpack.c.l.b16 %v885
            %v894 = vpack.c.b16 %v891, %v890
            %v895 = vpack.c.b16 %v893, %v892
            %vm898 = vcmask 261120
            %v900 = vsel %vm898, %v878, 0
            %v903 = vsel %vm898, %v879, 0
            %v906 = vsel %vm898, %v880, 0
            %v909 = vsel %vm898, %v881, 0
            %911 = vmatpush.bf16.msra.mxu0 0
            %912 = vmatpush.bf16.msra.mxu0 0
            %913 = vmatpush.bf16.msra.mxu0 0
            %914 = vmatpush.bf16.msra.mxu0 0
            %915 = vmatpush.bf16.msra.mxu0 0
            %916 = vmatpush.bf16.msra.mxu0 0
            %917 = vmatpush.bf16.msra.mxu0 %v895
            %918 = vmatpush.bf16.msra.mxu0 %v894
            %919 = vmatmul.bf16.gmra.mxu0 %v900
            %v920 = vpop.f32.mrf.mxu0
            %v921 = vadd.f32 0.0, %v920
            %v922 = vpop.f32.mrf.mxu0
            %v923 = vadd.f32 0.0, %v922
            %924 = vmatmul.bf16.gmra.mxu0 %v903
            %v925 = vpop.f32.mrf.mxu0
            %v926 = vadd.f32 0.0, %v925
            %v927 = vpop.f32.mrf.mxu0
            %v928 = vadd.f32 0.0, %v927
            %929 = vmatmul.bf16.gmra.mxu0 %v906
            %v930 = vpop.f32.mrf.mxu0
            %v931 = vadd.f32 0.0, %v930
            %v932 = vpop.f32.mrf.mxu0
            %v933 = vadd.f32 0.0, %v932
            %934 = vmatmul.bf16.gmra.mxu0 %v909
            %v935 = vpop.f32.mrf.mxu0
            %v936 = vadd.f32 0.0, %v935
            %v937 = vpop.f32.mrf.mxu0
            %v938 = vadd.f32 0.0, %v937
            %939 = vdwg.mxu0
            %v940 = vpack.c.bf16 %v921, %v921
            %v941 = vpack.c.bf16 %v923, %v923
            %v942 = vpack.c.bf16 %v926, %v926
            %v943 = vpack.c.bf16 %v928, %v928
            %v944 = vpack.c.bf16 %v931, %v931
            %v945 = vpack.c.bf16 %v933, %v933
            %v946 = vpack.c.bf16 %v936, %v936
            %v947 = vpack.c.bf16 %v938, %v938
            %vm948 = vcmask 125952
            %949 = vst.msk [vmem:[#allocation4] sm:$0xf] %vm948, %v940
            %950 = vst.msk [vmem:[#allocation4 + $0x4] sm:$0xf] %vm948, %v941
            %951 = vst.msk [vmem:[#allocation4 + $0x8] sm:$0xf] %vm948, %v942
            %952 = vst.msk [vmem:[#allocation4 + $0xc] sm:$0xf] %vm948, %v943
            %953 = vst.msk [vmem:[#allocation4 + $0x10] sm:$0xf] %vm948, %v944
            %954 = vst.msk [vmem:[#allocation4 + $0x14] sm:$0xf] %vm948, %v945
            %955 = vst.msk [vmem:[#allocation4 + $0x18] sm:$0xf] %vm948, %v946
            %956 = vst.msk [vmem:[#allocation4 + $0x1c] sm:$0xf] %vm948, %v947
            %965 = vrot.lane.b32.xlu0 %v921, 112
            %v966 = vpop.permute.xlu0 %965
            %967 = vrot.lane.b32.xlu0 %v923, 112
            %v968 = vpop.permute.xlu0 %967
            %969 = vrot.lane.b32.xlu0 %v926, 112
            %v970 = vpop.permute.xlu0 %969
            %971 = vrot.lane.b32.xlu0 %v928, 112
            %v972 = vpop.permute.xlu0 %971
            %973 = vrot.lane.b32.xlu0 %v931, 112
            %v974 = vpop.permute.xlu0 %973
            %975 = vrot.lane.b32.xlu0 %v933, 112
            %v976 = vpop.permute.xlu0 %975
            %977 = vrot.lane.b32.xlu0 %v936, 112
            %v978 = vpop.permute.xlu0 %977
            %979 = vrot.lane.b32.xlu0 %v938, 112
            %v980 = vpop.permute.xlu0 %979
            %vm989 = vcmask 7168
            %990 = vst.msk [vmem:[#allocation7] sm:$0xff] %vm989, %v966
            %991 = vst.msk [vmem:[#allocation7 + $0x8] sm:$0xff] %vm989, %v968
            %992 = vst.msk [vmem:[#allocation7 + $0x10] sm:$0xff] %vm989, %v970
            %993 = vst.msk [vmem:[#allocation7 + $0x18] sm:$0xff] %vm989, %v972
            %994 = vst.msk [vmem:[#allocation7 + $0x20] sm:$0xff] %vm989, %v974
            %995 = vst.msk [vmem:[#allocation7 + $0x28] sm:$0xff] %vm989, %v976
            %996 = vst.msk [vmem:[#allocation7 + $0x30] sm:$0xff] %vm989, %v978
            %997 = vst.msk [vmem:[#allocation7 + $0x38] sm:$0xff] %vm989, %v980
            %998 = vrot.lane.b32.xlu0 %v921, 111
            %v999 = vpop.permute.xlu0 %998
            %1000 = vrot.lane.b32.xlu0 %v923, 111
            %v1001 = vpop.permute.xlu0 %1000
            %1002 = vrot.lane.b32.xlu0 %v926, 111
            %v1003 = vpop.permute.xlu0 %1002
            %1004 = vrot.lane.b32.xlu0 %v928, 111
            %v1005 = vpop.permute.xlu0 %1004
            %1006 = vrot.lane.b32.xlu0 %v931, 111
            %v1007 = vpop.permute.xlu0 %1006
            %1008 = vrot.lane.b32.xlu0 %v933, 111
            %v1009 = vpop.permute.xlu0 %1008
            %1010 = vrot.lane.b32.xlu0 %v936, 111
            %v1011 = vpop.permute.xlu0 %1010
            %1012 = vrot.lane.b32.xlu0 %v938, 111
            %v1013 = vpop.permute.xlu0 %1012
            %1022 = vxpose.xlu0.b32.start [1/16] %v999, 128
            %1023 = vxpose.xlu0.b32.cont [2/16] %v1001, 128
            %1024 = vxpose.xlu0.b32.cont [3/16] %v1003, 128
            %1025 = vxpose.xlu0.b32.cont [4/16] %v1005, 128
            %1026 = vxpose.xlu0.b32.cont [5/16] %v1007, 128
            %1027 = vxpose.xlu0.b32.cont [6/16] %v1009, 128
            %1028 = vxpose.xlu0.b32.cont [7/16] %v1011, 128
            %1029 = vxpose.xlu0.b32.cont [8/16] %v1013, 128
            %1030 = vxpose.xlu0.b32.cont [9/16] 0.0, 128
            %1031 = vxpose.xlu0.b32.cont [10/16] 0.0, 128
            %1032 = vxpose.xlu0.b32.cont [11/16] 0.0, 128
            %1033 = vxpose.xlu0.b32.cont [12/16] 0.0, 128
            %1034 = vxpose.xlu0.b32.cont [13/16] 0.0, 128
            %1035 = vxpose.xlu0.b32.cont [14/16] 0.0, 128
            %1036 = vxpose.xlu0.b32.cont [15/16] 0.0, 128
            %1037 = vxpose.xlu0.b32.end [16/16] 0.0, 128
            %v1038 = vpop.trf.xlu0
            %v1039 = vpop.trf.xlu0
            %v1040 = vpop.trf.xlu0
            %v1041 = vpop.trf.xlu0
            %v1042 = vpop.trf.xlu0
            %v1043 = vpop.trf.xlu0
            %v1044 = vpop.trf.xlu0
            %v1045 = vpop.trf.xlu0
            %v1046 = vpop.trf.xlu0
            %v1047 = vpop.trf.xlu0
            %v1048 = vpop.trf.xlu0
            %v1049 = vpop.trf.xlu0
            %v1050 = vpop.trf.xlu0
            %v1051 = vpop.trf.xlu0
            %v1052 = vpop.trf.xlu0
            %v1053 = vpop.trf.xlu0
            %vm1054 = vcmask 516096
            %1055 = vst.msk [vmem:[#allocation8] sm:$0x1] %vm1054, %v1038
          $region56: #{daegc_forward.1} parent=51 // pred_fallthru
            _
          %v1056 = vld [vmem:[%s292] sm:$0xff]
          %v1057 = vld [vmem:[%s292 + $0x8] sm:$0xff]
          %v1058 = vld [vmem:[%s292 + $0x10] sm:$0xff]
          %v1059 = vld [vmem:[%s292 + $0x18] sm:$0xff]
          %v1060 = vld [vmem:[%s292 + $0x20] sm:$0xff]
          %v1061 = vld [vmem:[%s292 + $0x28] sm:$0xff]
          %v1062 = vld [vmem:[%s292 + $0x30] sm:$0xff]
          %v1063 = vld [vmem:[%s292 + $0x38] sm:$0xff]
          %vm1064 = vcmp.ne.f32.partialorder %v1056, -inf
          %vm1065 = vcmp.ne.f32.partialorder %v1057, -inf
          %vm1066 = vcmp.ne.f32.partialorder %v1058, -inf
          %vm1067 = vcmp.ne.f32.partialorder %v1059, -inf
          %vm1068 = vcmp.ne.f32.partialorder %v1060, -inf
          %vm1069 = vcmp.ne.f32.partialorder %v1061, -inf
          %vm1070 = vcmp.ne.f32.partialorder %v1062, -inf
          %vm1071 = vcmp.ne.f32.partialorder %v1063, -inf
          %v1072 = vsel %vm1064, %v1056, 0.0
          %v1073 = vsel %vm1065, %v1057, 0.0
          %v1074 = vsel %vm1066, %v1058, 0.0
          %v1075 = vsel %vm1067, %v1059, 0.0
          %v1076 = vsel %vm1068, %v1060, 0.0
          %v1077 = vsel %vm1069, %v1061, 0.0
          %v1078 = vsel %vm1070, %v1062, 0.0
          %v1079 = vsel %vm1071, %v1063, 0.0
          %s1080 = scalar_lea.vmem [#allocation7], %s310
          %v1081 = vld [vmem:[%s1080] sm:$0xff]
          %v1082 = vld [vmem:[%s1080 + $0x8] sm:$0xff]
          %v1083 = vld [vmem:[%s1080 + $0x10] sm:$0xff]
          %v1084 = vld [vmem:[%s1080 + $0x18] sm:$0xff]
          %v1085 = vld [vmem:[%s1080 + $0x20] sm:$0xff]
          %v1086 = vld [vmem:[%s1080 + $0x28] sm:$0xff]
          %v1087 = vld [vmem:[%s1080 + $0x30] sm:$0xff]
          %v1088 = vld [vmem:[%s1080 + $0x38] sm:$0xff]
          %v1089 = vld [vmem:[#allocation8] sm:$0x1]
          %1091 = vset.pattern.permute.xlu0 0
          %1092 = vperm.xlu0 %1091, %v1081
          %v1093 = vpop.permute.xlu0 %1092
          %1096 = vset.pattern.permute.xlu0 0
          %1097 = vperm.xlu0 %1096, %v1082
          %v1098 = vpop.permute.xlu0 %1097
          %1101 = vset.pattern.permute.xlu0 0
          %1102 = vperm.xlu0 %1101, %v1083
          %v1103 = vpop.permute.xlu0 %1102
          %1106 = vset.pattern.permute.xlu0 0
          %1107 = vperm.xlu0 %1106, %v1084
          %v1108 = vpop.permute.xlu0 %1107
          %1111 = vset.pattern.permute.xlu0 0
          %1112 = vperm.xlu0 %1111, %v1085
          %v1113 = vpop.permute.xlu0 %1112
          %1116 = vset.pattern.permute.xlu0 0
          %1117 = vperm.xlu0 %1116, %v1086
          %v1118 = vpop.permute.xlu0 %1117
          %1121 = vset.pattern.permute.xlu0 0
          %1122 = vperm.xlu0 %1121, %v1087
          %v1123 = vpop.permute.xlu0 %1122
          %1126 = vset.pattern.permute.xlu0 0
          %1127 = vperm.xlu0 %1126, %v1088
          %v1128 = vpop.permute.xlu0 %1127
          %v1131 = vperm.slane %v1089, 0
          %v1133 = vadd.f32 %v1093, %v1131
          %v1134 = vadd.f32 %v1098, %v1131
          %v1135 = vadd.f32 %v1103, %v1131
          %v1136 = vadd.f32 %v1108, %v1131
          %v1137 = vadd.f32 %v1113, %v1131
          %v1138 = vadd.f32 %v1118, %v1131
          %v1139 = vadd.f32 %v1123, %v1131
          %v1140 = vadd.f32 %v1128, %v1131
          %v1141 = vmul.f32 %v1133, %v1072
          %v1142 = vmul.f32 %v1134, %v1073
          %v1143 = vmul.f32 %v1135, %v1074
          %v1144 = vmul.f32 %v1136, %v1075
          %v1145 = vmul.f32 %v1137, %v1076
          %v1146 = vmul.f32 %v1138, %v1077
          %v1147 = vmul.f32 %v1139, %v1078
          %v1148 = vmul.f32 %v1140, %v1079
          %vm1149 = vcmp.gt.f32.partialorder %v1141, 0.0
          %vm1150 = vcmp.gt.f32.partialorder %v1142, 0.0
          %vm1151 = vcmp.gt.f32.partialorder %v1143, 0.0
          %vm1152 = vcmp.gt.f32.partialorder %v1144, 0.0
          %vm1153 = vcmp.gt.f32.partialorder %v1145, 0.0
          %vm1154 = vcmp.gt.f32.partialorder %v1146, 0.0
          %vm1155 = vcmp.gt.f32.partialorder %v1147, 0.0
          %vm1156 = vcmp.gt.f32.partialorder %v1148, 0.0
          %v1157 = vmul.f32 %v1141, 0.2
          %v1158 = vmul.f32 %v1142, 0.2
          %v1159 = vmul.f32 %v1143, 0.2
          %v1160 = vmul.f32 %v1144, 0.2
          %v1161 = vmul.f32 %v1145, 0.2
          %v1162 = vmul.f32 %v1146, 0.2
          %v1163 = vmul.f32 %v1147, 0.2
          %v1164 = vmul.f32 %v1148, 0.2
          %v1165 = vsel %vm1149, %v1141, %v1157
          %v1166 = vsel %vm1150, %v1142, %v1158
          %v1167 = vsel %vm1151, %v1143, %v1159
          %v1168 = vsel %vm1152, %v1144, %v1160
          %v1169 = vsel %vm1153, %v1145, %v1161
          %v1170 = vsel %vm1154, %v1146, %v1162
          %v1171 = vsel %vm1155, %v1147, %v1163
          %v1172 = vsel %vm1156, %v1148, %v1164
          %v1173 = vsel %vm1064, %v1165, -9e+15
          %v1174 = vsel %vm1065, %v1166, -9e+15
          %v1175 = vsel %vm1066, %v1167, -9e+15
          %v1176 = vsel %vm1067, %v1168, -9e+15
          %v1177 = vsel %vm1068, %v1169, -9e+15
          %v1178 = vsel %vm1069, %v1170, -9e+15
          %v1179 = vsel %vm1070, %v1171, -9e+15
          %v1180 = vsel %vm1071, %v1172, -9e+15
          %vm1181 = vcmask 523264
          %v1182 = vsel %vm1181, %v1173, -inf
          %1183 = vmax.xlane.f32.xlu0 %v1182
          %v1184 = vpop.xlane.xlu0 %1183
          %v1185 = vsel %vm1181, %v1174, -inf
          %1186 = vmax.xlane.f32.xlu0 %v1185
          %v1187 = vpop.xlane.xlu0 %1186
          %v1188 = vsel %vm1181, %v1175, -inf
          %1189 = vmax.xlane.f32.xlu0 %v1188
          %v1190 = vpop.xlane.xlu0 %1189
          %v1191 = vsel %vm1181, %v1176, -inf
          %1192 = vmax.xlane.f32.xlu0 %v1191
          %v1193 = vpop.xlane.xlu0 %1192
          %v1194 = vsel %vm1181, %v1177, -inf
          %1195 = vmax.xlane.f32.xlu0 %v1194
          %v1196 = vpop.xlane.xlu0 %1195
          %v1197 = vsel %vm1181, %v1178, -inf
          %1198 = vmax.xlane.f32.xlu0 %v1197
          %v1199 = vpop.xlane.xlu0 %1198
          %v1200 = vsel %vm1181, %v1179, -inf
          %1201 = vmax.xlane.f32.xlu0 %v1200
          %v1202 = vpop.xlane.xlu0 %1201
          %v1203 = vsel %vm1181, %v1180, -inf
          %1204 = vmax.xlane.f32.xlu0 %v1203
          %v1205 = vpop.xlane.xlu0 %1204
          %v1206 = vsub.f32 %v1173, %v1184
          %v1207 = vsub.f32 %v1174, %v1187
          %v1208 = vsub.f32 %v1175, %v1190
          %v1209 = vsub.f32 %v1176, %v1193
          %v1210 = vsub.f32 %v1177, %v1196
          %v1211 = vsub.f32 %v1178, %v1199
          %v1212 = vsub.f32 %v1179, %v1202
          %v1213 = vsub.f32 %v1180, %v1205
          %v1214 = vmul.f32 %v1206, 1.442695
          %v1215 = vpow.pop %v1214
          %v1216 = vmul.f32 %v1207, 1.442695
          %v1217 = vpow.pop %v1216
          %v1218 = vmul.f32 %v1208, 1.442695
          %v1219 = vpow.pop %v1218
          %v1220 = vmul.f32 %v1209, 1.442695
          %v1221 = vpow.pop %v1220
          %v1222 = vmul.f32 %v1210, 1.442695
          %v1223 = vpow.pop %v1222
          %v1224 = vmul.f32 %v1211, 1.442695
          %v1225 = vpow.pop %v1224
          %v1226 = vmul.f32 %v1212, 1.442695
          %v1227 = vpow.pop %v1226
          %v1228 = vmul.f32 %v1213, 1.442695
          %v1229 = vpow.pop %v1228
          %v1230 = vsel %vm1181, %v1215, 0.0
          %1231 = vadd.xlane.f32.xlu0 %v1230
          %v1232 = vpop.xlane.xlu0 %1231
          %v1233 = vsel %vm1181, %v1217, 0.0
          %1234 = vadd.xlane.f32.xlu0 %v1233
          %v1235 = vpop.xlane.xlu0 %1234
          %v1236 = vsel %vm1181, %v1219, 0.0
          %1237 = vadd.xlane.f32.xlu0 %v1236
          %v1238 = vpop.xlane.xlu0 %1237
          %v1239 = vsel %vm1181, %v1221, 0.0
          %1240 = vadd.xlane.f32.xlu0 %v1239
          %v1241 = vpop.xlane.xlu0 %1240
          %v1242 = vsel %vm1181, %v1223, 0.0
          %1243 = vadd.xlane.f32.xlu0 %v1242
          %v1244 = vpop.xlane.xlu0 %1243
          %v1245 = vsel %vm1181, %v1225, 0.0
          %1246 = vadd.xlane.f32.xlu0 %v1245
          %v1247 = vpop.xlane.xlu0 %1246
          %v1248 = vsel %vm1181, %v1227, 0.0
          %1249 = vadd.xlane.f32.xlu0 %v1248
          %v1250 = vpop.xlane.xlu0 %1249
          %v1251 = vsel %vm1181, %v1229, 0.0
          %1252 = vadd.xlane.f32.xlu0 %v1251
          %v1253 = vpop.xlane.xlu0 %1252
          %v1254 = vrcp.pop %v1232
          %v1255 = vrcp.pop %v1235
          %v1256 = vrcp.pop %v1238
          %v1257 = vrcp.pop %v1241
          %v1258 = vrcp.pop %v1244
          %v1259 = vrcp.pop %v1247
          %v1260 = vrcp.pop %v1250
          %v1261 = vrcp.pop %v1253
          %v1262 = vmul.f32 %v1215, %v1254
          %v1263 = vmul.f32 %v1217, %v1255
          %v1264 = vmul.f32 %v1219, %v1256
          %v1265 = vmul.f32 %v1221, %v1257
          %v1266 = vmul.f32 %v1223, %v1258
          %v1267 = vmul.f32 %v1225, %v1259
          %v1268 = vmul.f32 %v1227, %v1260
          %v1269 = vmul.f32 %v1229, %v1261
          %v1270 = vpack.c.bf16 %v1263, %v1262
          %v1271 = vpack.c.bf16 %v1265, %v1264
          %v1272 = vpack.c.bf16 %v1267, %v1266
          %v1273 = vpack.c.bf16 %v1269, %v1268
          %v1274 = vld [vmem:[#allocation4] sm:$0xf]
          %v1275 = vld [vmem:[#allocation4 + $0x4] sm:$0xf]
          %v1276 = vld [vmem:[#allocation4 + $0x8] sm:$0xf]
          %v1277 = vld [vmem:[#allocation4 + $0xc] sm:$0xf]
          %v1278 = vld [vmem:[#allocation4 + $0x10] sm:$0xf]
          %v1279 = vld [vmem:[#allocation4 + $0x14] sm:$0xf]
          %v1280 = vld [vmem:[#allocation4 + $0x18] sm:$0xf]
          %v1281 = vld [vmem:[#allocation4 + $0x1c] sm:$0xf]
          %v1290 = vunpack.c.l.b16 %v1274
          %v1291 = vunpack.c.l.b16 %v1275
          %v1292 = vunpack.c.l.b16 %v1276
          %v1293 = vunpack.c.l.b16 %v1277
          %v1294 = vunpack.c.l.b16 %v1278
          %v1295 = vunpack.c.l.b16 %v1279
          %v1296 = vunpack.c.l.b16 %v1280
          %v1297 = vunpack.c.l.b16 %v1281
          %v1298 = vpack.c.b16 %v1291, %v1290
          %v1299 = vpack.c.b16 %v1293, %v1292
          %v1300 = vpack.c.b16 %v1295, %v1294
          %v1301 = vpack.c.b16 %v1297, %v1296
          %v1307 = vsel %vm1181, %v1270, 0
          %v1310 = vsel %vm1181, %v1271, 0
          %v1313 = vsel %vm1181, %v1272, 0
          %v1316 = vsel %vm1181, %v1273, 0
          %1318 = vmatpush.bf16.msra.mxu0 0
          %1319 = vmatpush.bf16.msra.mxu0 0
          %1320 = vmatpush.bf16.msra.mxu0 0
          %1321 = vmatpush.bf16.msra.mxu0 0
          %1322 = vmatpush.bf16.msra.mxu0 %v1301
          %1323 = vmatpush.bf16.msra.mxu0 %v1300
          %1324 = vmatpush.bf16.msra.mxu0 %v1299
          %1325 = vmatpush.bf16.msra.mxu0 %v1298
          %1326 = vmatmul.bf16.gmra.mxu0 %v1307
          %v1327 = vpop.f32.mrf.mxu0
          %v1328 = vadd.f32 0.0, %v1327
          %v1329 = vpop.f32.mrf.mxu0
          %v1330 = vadd.f32 0.0, %v1329
          %1331 = vmatmul.bf16.gmra.mxu0 %v1310
          %v1332 = vpop.f32.mrf.mxu0
          %v1333 = vadd.f32 0.0, %v1332
          %v1334 = vpop.f32.mrf.mxu0
          %v1335 = vadd.f32 0.0, %v1334
          %1336 = vmatmul.bf16.gmra.mxu0 %v1313
          %v1337 = vpop.f32.mrf.mxu0
          %v1338 = vadd.f32 0.0, %v1337
          %v1339 = vpop.f32.mrf.mxu0
          %v1340 = vadd.f32 0.0, %v1339
          %1341 = vmatmul.bf16.gmra.mxu0 %v1316
          %v1342 = vpop.f32.mrf.mxu0
          %v1343 = vadd.f32 0.0, %v1342
          %v1344 = vpop.f32.mrf.mxu0
          %v1345 = vadd.f32 0.0, %v1344
          %1346 = vdwg.mxu0
          %vm1347 = vcmp.gt.f32.partialorder %v1328, 0.0
          %vm1348 = vcmp.gt.f32.partialorder %v1330, 0.0
          %vm1349 = vcmp.gt.f32.partialorder %v1333, 0.0
          %vm1350 = vcmp.gt.f32.partialorder %v1335, 0.0
          %vm1351 = vcmp.gt.f32.partialorder %v1338, 0.0
          %vm1352 = vcmp.gt.f32.partialorder %v1340, 0.0
          %vm1353 = vcmp.gt.f32.partialorder %v1343, 0.0
          %vm1354 = vcmp.gt.f32.partialorder %v1345, 0.0
          %v1355 = vmul.f32 %v1328, 1.442695
          %v1356 = vpow.pop %v1355
          %v1357 = vmul.f32 %v1330, 1.442695
          %v1358 = vpow.pop %v1357
          %v1359 = vmul.f32 %v1333, 1.442695
          %v1360 = vpow.pop %v1359
          %v1361 = vmul.f32 %v1335, 1.442695
          %v1362 = vpow.pop %v1361
          %v1363 = vmul.f32 %v1338, 1.442695
          %v1364 = vpow.pop %v1363
          %v1365 = vmul.f32 %v1340, 1.442695
          %v1366 = vpow.pop %v1365
          %v1367 = vmul.f32 %v1343, 1.442695
          %v1368 = vpow.pop %v1367
          %v1369 = vmul.f32 %v1345, 1.442695
          %v1370 = vpow.pop %v1369
          %v1371 = vsub.f32 %v1356, 1.0
          %v1372 = vsub.f32 %v1358, 1.0
          %v1373 = vsub.f32 %v1360, 1.0
          %v1374 = vsub.f32 %v1362, 1.0
          %v1375 = vsub.f32 %v1364, 1.0
          %v1376 = vsub.f32 %v1366, 1.0
          %v1377 = vsub.f32 %v1368, 1.0
          %v1378 = vsub.f32 %v1370, 1.0
          %v1379 = vsel %vm1347, %v1328, %v1371
          %v1380 = vsel %vm1348, %v1330, %v1372
          %v1381 = vsel %vm1349, %v1333, %v1373
          %v1382 = vsel %vm1350, %v1335, %v1374
          %v1383 = vsel %vm1351, %v1338, %v1375
          %v1384 = vsel %vm1352, %v1340, %v1376
          %v1385 = vsel %vm1353, %v1343, %v1377
          %v1386 = vsel %vm1354, %v1345, %v1378
          %v1387 = vmul.f32 %v1379, %v1379
          %v1388 = vmul.f32 %v1380, %v1380
          %v1389 = vmul.f32 %v1381, %v1381
          %v1390 = vmul.f32 %v1382, %v1382
          %v1391 = vmul.f32 %v1383, %v1383
          %v1392 = vmul.f32 %v1384, %v1384
          %v1393 = vmul.f32 %v1385, %v1385
          %v1394 = vmul.f32 %v1386, %v1386
          %vm1395 = vcmask 130048
          %v1396 = vsel %vm1395, %v1387, 0.0
          %1397 = vadd.xlane.f32.xlu0 %v1396
          %v1398 = vpop.xlane.xlu0 %1397
          %v1399 = vsel %vm1395, %v1388, 0.0
          %1400 = vadd.xlane.f32.xlu0 %v1399
          %v1401 = vpop.xlane.xlu0 %1400
          %v1402 = vsel %vm1395, %v1389, 0.0
          %1403 = vadd.xlane.f32.xlu0 %v1402
          %v1404 = vpop.xlane.xlu0 %1403
          %v1405 = vsel %vm1395, %v1390, 0.0
          %1406 = vadd.xlane.f32.xlu0 %v1405
          %v1407 = vpop.xlane.xlu0 %1406
          %v1408 = vsel %vm1395, %v1391, 0.0
          %1409 = vadd.xlane.f32.xlu0 %v1408
          %v1410 = vpop.xlane.xlu0 %1409
          %v1411 = vsel %vm1395, %v1392, 0.0
          %1412 = vadd.xlane.f32.xlu0 %v1411
          %v1413 = vpop.xlane.xlu0 %1412
          %v1414 = vsel %vm1395, %v1393, 0.0
          %1415 = vadd.xlane.f32.xlu0 %v1414
          %v1416 = vpop.xlane.xlu0 %1415
          %v1417 = vsel %vm1395, %v1394, 0.0
          %1418 = vadd.xlane.f32.xlu0 %v1417
          %v1419 = vpop.xlane.xlu0 %1418
          %v1420 = vrsqrt.pop %v1398
          %v1421 = vmul.f32 %v1420, %v1398
          %v1422 = vmul.f32 %v1421, %v1420
          %v1423 = vmul.f32 0.5, %v1422
          %v1424 = vsub.f32 1.5, %v1423
          %v1425 = vmul.f32 %v1420, %v1424
          %v1426 = vmul.f32 %v1398, %v1425
          %vm1427 = vcmp.eq.f32.partialorder %v1398, inf
          %v1428 = vsel %vm1427, %v1398, %v1426
          %vm1429 = vcmp.eq.f32.partialorder %v1398, 0.0
          %v1430 = vand.u32 %v1398, 2147483648
          %v1431 = vsel %vm1429, %v1430, %v1428
          %v1432 = vrsqrt.pop %v1401
          %v1433 = vmul.f32 %v1432, %v1401
          %v1434 = vmul.f32 %v1433, %v1432
          %v1435 = vmul.f32 0.5, %v1434
          %v1436 = vsub.f32 1.5, %v1435
          %v1437 = vmul.f32 %v1432, %v1436
          %v1438 = vmul.f32 %v1401, %v1437
          %vm1439 = vcmp.eq.f32.partialorder %v1401, inf
          %v1440 = vsel %vm1439, %v1401, %v1438
          %vm1441 = vcmp.eq.f32.partialorder %v1401, 0.0
          %v1442 = vand.u32 %v1401, 2147483648
          %v1443 = vsel %vm1441, %v1442, %v1440
          %v1444 = vrsqrt.pop %v1404
          %v1445 = vmul.f32 %v1444, %v1404
          %v1446 = vmul.f32 %v1445, %v1444
          %v1447 = vmul.f32 0.5, %v1446
          %v1448 = vsub.f32 1.5, %v1447
          %v1449 = vmul.f32 %v1444, %v1448
          %v1450 = vmul.f32 %v1404, %v1449
          %vm1451 = vcmp.eq.f32.partialorder %v1404, inf
          %v1452 = vsel %vm1451, %v1404, %v1450
          %vm1453 = vcmp.eq.f32.partialorder %v1404, 0.0
          %v1454 = vand.u32 %v1404, 2147483648
          %v1455 = vsel %vm1453, %v1454, %v1452
          %v1456 = vrsqrt.pop %v1407
          %v1457 = vmul.f32 %v1456, %v1407
          %v1458 = vmul.f32 %v1457, %v1456
          %v1459 = vmul.f32 0.5, %v1458
          %v1460 = vsub.f32 1.5, %v1459
          %v1461 = vmul.f32 %v1456, %v1460
          %v1462 = vmul.f32 %v1407, %v1461
          %vm1463 = vcmp.eq.f32.partialorder %v1407, inf
          %v1464 = vsel %vm1463, %v1407, %v1462
          %vm1465 = vcmp.eq.f32.partialorder %v1407, 0.0
          %v1466 = vand.u32 %v1407, 2147483648
          %v1467 = vsel %vm1465, %v1466, %v1464
          %v1468 = vrsqrt.pop %v1410
          %v1469 = vmul.f32 %v1468, %v1410
          %v1470 = vmul.f32 %v1469, %v1468
          %v1471 = vmul.f32 0.5, %v1470
          %v1472 = vsub.f32 1.5, %v1471
          %v1473 = vmul.f32 %v1468, %v1472
          %v1474 = vmul.f32 %v1410, %v1473
          %vm1475 = vcmp.eq.f32.partialorder %v1410, inf
          %v1476 = vsel %vm1475, %v1410, %v1474
          %vm1477 = vcmp.eq.f32.partialorder %v1410, 0.0
          %v1478 = vand.u32 %v1410, 2147483648
          %v1479 = vsel %vm1477, %v1478, %v1476
          %v1480 = vrsqrt.pop %v1413
          %v1481 = vmul.f32 %v1480, %v1413
          %v1482 = vmul.f32 %v1481, %v1480
          %v1483 = vmul.f32 0.5, %v1482
          %v1484 = vsub.f32 1.5, %v1483
          %v1485 = vmul.f32 %v1480, %v1484
          %v1486 = vmul.f32 %v1413, %v1485
          %vm1487 = vcmp.eq.f32.partialorder %v1413, inf
          %v1488 = vsel %vm1487, %v1413, %v1486
          %vm1489 = vcmp.eq.f32.partialorder %v1413, 0.0
          %v1490 = vand.u32 %v1413, 2147483648
          %v1491 = vsel %vm1489, %v1490, %v1488
          %v1492 = vrsqrt.pop %v1416
          %v1493 = vmul.f32 %v1492, %v1416
          %v1494 = vmul.f32 %v1493, %v1492
          %v1495 = vmul.f32 0.5, %v1494
          %v1496 = vsub.f32 1.5, %v1495
          %v1497 = vmul.f32 %v1492, %v1496
          %v1498 = vmul.f32 %v1416, %v1497
          %vm1499 = vcmp.eq.f32.partialorder %v1416, inf
          %v1500 = vsel %vm1499, %v1416, %v1498
          %vm1501 = vcmp.eq.f32.partialorder %v1416, 0.0
          %v1502 = vand.u32 %v1416, 2147483648
          %v1503 = vsel %vm1501, %v1502, %v1500
          %v1504 = vrsqrt.pop %v1419
          %v1505 = vmul.f32 %v1504, %v1419
          %v1506 = vmul.f32 %v1505, %v1504
          %v1507 = vmul.f32 0.5, %v1506
          %v1508 = vsub.f32 1.5, %v1507
          %v1509 = vmul.f32 %v1504, %v1508
          %v1510 = vmul.f32 %v1419, %v1509
          %vm1511 = vcmp.eq.f32.partialorder %v1419, inf
          %v1512 = vsel %vm1511, %v1419, %v1510
          %vm1513 = vcmp.eq.f32.partialorder %v1419, 0.0
          %v1514 = vand.u32 %v1419, 2147483648
          %v1515 = vsel %vm1513, %v1514, %v1512
          %v1516 = vmax.f32 %v1431, 1e-12
          %v1517 = vmax.f32 %v1443, 1e-12
          %v1518 = vmax.f32 %v1455, 1e-12
          %v1519 = vmax.f32 %v1467, 1e-12
          %v1520 = vmax.f32 %v1479, 1e-12
          %v1521 = vmax.f32 %v1491, 1e-12
          %v1522 = vmax.f32 %v1503, 1e-12
          %v1523 = vmax.f32 %v1515, 1e-12
          %v1524 = vrcp.pop %v1516
          %v1525 = vmul.f32 %v1516, %v1524
          %v1526 = vsub.f32 1.0, %v1525
          %v1527 = vmul.f32 %v1524, %v1526
          %v1528 = vadd.f32 %v1524, %v1527
          %vm1529 = vweird.f32 %v1516
          %vm1530 = vweird.f32 %v1524
          %vm1531 = vmor %vm1529, %vm1530
          %v1532 = vsel %vm1531, %v1524, %v1528
          %v1533 = vand.u32 2147483647, %v1516
          %vm1534 = vcmp.eq.f32.partialorder %v1533, 8.507059e+37
          %v1535 = vand.u32 %v1516, 2147483648
          %v1536 = vor.u32 1.1754944e-38, %v1535
          %v1537 = vsel %vm1534, %v1536, %v1532
          %v1538 = vmul.f32 %v1379, %v1537
          %v1539 = vrcp.pop %v1517
          %v1540 = vmul.f32 %v1517, %v1539
          %v1541 = vsub.f32 1.0, %v1540
          %v1542 = vmul.f32 %v1539, %v1541
          %v1543 = vadd.f32 %v1539, %v1542
          %vm1544 = vweird.f32 %v1517
          %vm1545 = vweird.f32 %v1539
          %vm1546 = vmor %vm1544, %vm1545
          %v1547 = vsel %vm1546, %v1539, %v1543
          %v1548 = vand.u32 2147483647, %v1517
          %vm1549 = vcmp.eq.f32.partialorder %v1548, 8.507059e+37
          %v1550 = vand.u32 %v1517, 2147483648
          %v1551 = vor.u32 1.1754944e-38, %v1550
          %v1552 = vsel %vm1549, %v1551, %v1547
          %v1553 = vmul.f32 %v1380, %v1552
          %v1554 = vrcp.pop %v1518
          %v1555 = vmul.f32 %v1518, %v1554
          %v1556 = vsub.f32 1.0, %v1555
          %v1557 = vmul.f32 %v1554, %v1556
          %v1558 = vadd.f32 %v1554, %v1557
          %vm1559 = vweird.f32 %v1518
          %vm1560 = vweird.f32 %v1554
          %vm1561 = vmor %vm1559, %vm1560
          %v1562 = vsel %vm1561, %v1554, %v1558
          %v1563 = vand.u32 2147483647, %v1518
          %vm1564 = vcmp.eq.f32.partialorder %v1563, 8.507059e+37
          %v1565 = vand.u32 %v1518, 2147483648
          %v1566 = vor.u32 1.1754944e-38, %v1565
          %v1567 = vsel %vm1564, %v1566, %v1562
          %v1568 = vmul.f32 %v1381, %v1567
          %v1569 = vrcp.pop %v1519
          %v1570 = vmul.f32 %v1519, %v1569
          %v1571 = vsub.f32 1.0, %v1570
          %v1572 = vmul.f32 %v1569, %v1571
          %v1573 = vadd.f32 %v1569, %v1572
          %vm1574 = vweird.f32 %v1519
          %vm1575 = vweird.f32 %v1569
          %vm1576 = vmor %vm1574, %vm1575
          %v1577 = vsel %vm1576, %v1569, %v1573
          %v1578 = vand.u32 2147483647, %v1519
          %vm1579 = vcmp.eq.f32.partialorder %v1578, 8.507059e+37
          %v1580 = vand.u32 %v1519, 2147483648
          %v1581 = vor.u32 1.1754944e-38, %v1580
          %v1582 = vsel %vm1579, %v1581, %v1577
          %v1583 = vmul.f32 %v1382, %v1582
          %v1584 = vrcp.pop %v1520
          %v1585 = vmul.f32 %v1520, %v1584
          %v1586 = vsub.f32 1.0, %v1585
          %v1587 = vmul.f32 %v1584, %v1586
          %v1588 = vadd.f32 %v1584, %v1587
          %vm1589 = vweird.f32 %v1520
          %vm1590 = vweird.f32 %v1584
          %vm1591 = vmor %vm1589, %vm1590
          %v1592 = vsel %vm1591, %v1584, %v1588
          %v1593 = vand.u32 2147483647, %v1520
          %vm1594 = vcmp.eq.f32.partialorder %v1593, 8.507059e+37
          %v1595 = vand.u32 %v1520, 2147483648
          %v1596 = vor.u32 1.1754944e-38, %v1595
          %v1597 = vsel %vm1594, %v1596, %v1592
          %v1598 = vmul.f32 %v1383, %v1597
          %v1599 = vrcp.pop %v1521
          %v1600 = vmul.f32 %v1521, %v1599
          %v1601 = vsub.f32 1.0, %v1600
          %v1602 = vmul.f32 %v1599, %v1601
          %v1603 = vadd.f32 %v1599, %v1602
          %vm1604 = vweird.f32 %v1521
          %vm1605 = vweird.f32 %v1599
          %vm1606 = vmor %vm1604, %vm1605
          %v1607 = vsel %vm1606, %v1599, %v1603
          %v1608 = vand.u32 2147483647, %v1521
          %vm1609 = vcmp.eq.f32.partialorder %v1608, 8.507059e+37
          %v1610 = vand.u32 %v1521, 2147483648
          %v1611 = vor.u32 1.1754944e-38, %v1610
          %v1612 = vsel %vm1609, %v1611, %v1607
          %v1613 = vmul.f32 %v1384, %v1612
          %v1614 = vrcp.pop %v1522
          %v1615 = vmul.f32 %v1522, %v1614
          %v1616 = vsub.f32 1.0, %v1615
          %v1617 = vmul.f32 %v1614, %v1616
          %v1618 = vadd.f32 %v1614, %v1617
          %vm1619 = vweird.f32 %v1522
          %vm1620 = vweird.f32 %v1614
          %vm1621 = vmor %vm1619, %vm1620
          %v1622 = vsel %vm1621, %v1614, %v1618
          %v1623 = vand.u32 2147483647, %v1522
          %vm1624 = vcmp.eq.f32.partialorder %v1623, 8.507059e+37
          %v1625 = vand.u32 %v1522, 2147483648
          %v1626 = vor.u32 1.1754944e-38, %v1625
          %v1627 = vsel %vm1624, %v1626, %v1622
          %v1628 = vmul.f32 %v1385, %v1627
          %v1629 = vrcp.pop %v1523
          %v1630 = vmul.f32 %v1523, %v1629
          %v1631 = vsub.f32 1.0, %v1630
          %v1632 = vmul.f32 %v1629, %v1631
          %v1633 = vadd.f32 %v1629, %v1632
          %vm1634 = vweird.f32 %v1523
          %vm1635 = vweird.f32 %v1629
          %vm1636 = vmor %vm1634, %vm1635
          %v1637 = vsel %vm1636, %v1629, %v1633
          %v1638 = vand.u32 2147483647, %v1523
          %vm1639 = vcmp.eq.f32.partialorder %v1638, 8.507059e+37
          %v1640 = vand.u32 %v1523, 2147483648
          %v1641 = vor.u32 1.1754944e-38, %v1640
          %v1642 = vsel %vm1639, %v1641, %v1637
          %v1643 = vmul.f32 %v1386, %v1642
          %s1644 = scalar_lea.vmem [#allocation5], %s310
          %1645 = vst.msk [vmem:[%s1644] sm:$0xff] %vm1395, %v1538
          %1646 = vst.msk [vmem:[%s1644 + $0x8] sm:$0xff] %vm1395, %v1553
          %1647 = vst.msk [vmem:[%s1644 + $0x10] sm:$0xff] %vm1395, %v1568
          %1648 = vst.msk [vmem:[%s1644 + $0x18] sm:$0xff] %vm1395, %v1583
          %1649 = vst.msk [vmem:[%s1644 + $0x20] sm:$0xff] %vm1395, %v1598
          %1650 = vst.msk [vmem:[%s1644 + $0x28] sm:$0xff] %vm1395, %v1613
          %1651 = vst.msk [vmem:[%s1644 + $0x30] sm:$0xff] %vm1395, %v1628
          %1652 = vst.msk [vmem:[%s1644 + $0x38] sm:$0xff] %vm1395, %v1643
        $region52: #{daegc_forward.1} parent=39 // pred_fallthru
          _
        %p1653 = scmp.eq.s32.totalorder %s25, 2
        // Predicated region
        $region57: #{daegc_forward.1} parent=39 // pred_check
          %p1654 = pneg %p1653
        $region58: #{daegc_forward.1} parent=39 // pred_check_branch
          %1656 = sbr.rel (%p1654) target = $region60
        $region59: #{daegc_forward.1} parent=39 // pred_region
          %p1657 = scmp.eq.s32.totalorder %s26, 0
          // Predicated region
          $region61: #{daegc_forward.1} parent=59 // pred_check
            %p1658 = pneg %p1657
          $region62: #{daegc_forward.1} parent=59 // pred_check_branch
            %1660 = sbr.rel (%p1658) target = $region64
          $region63: #{daegc_forward.1} parent=59 // pred_region
            %v1661 = vld [vmem:[#allocation5] sm:$0xff]
            %v1662 = vld [vmem:[#allocation5 + $0x8] sm:$0xff]
            %v1663 = vld [vmem:[#allocation5 + $0x10] sm:$0xff]
            %v1664 = vld [vmem:[#allocation5 + $0x18] sm:$0xff]
            %v1665 = vld [vmem:[#allocation5 + $0x20] sm:$0xff]
            %v1666 = vld [vmem:[#allocation5 + $0x28] sm:$0xff]
            %v1667 = vld [vmem:[#allocation5 + $0x30] sm:$0xff]
            %v1668 = vld [vmem:[#allocation5 + $0x38] sm:$0xff]
            %1669 = vxpose.xlu0.b32.start [1/16] %v1661, 128
            %1670 = vxpose.xlu0.b32.cont [2/16] %v1662, 128
            %1671 = vxpose.xlu0.b32.cont [3/16] %v1663, 128
            %1672 = vxpose.xlu0.b32.cont [4/16] %v1664, 128
            %1673 = vxpose.xlu0.b32.cont [5/16] %v1665, 128
            %1674 = vxpose.xlu0.b32.cont [6/16] %v1666, 128
            %1675 = vxpose.xlu0.b32.cont [7/16] %v1667, 128
            %1676 = vxpose.xlu0.b32.cont [8/16] %v1668, 128
            %1677 = vxpose.xlu0.b32.cont [9/16] 0.0, 128
            %1678 = vxpose.xlu0.b32.cont [10/16] 0.0, 128
            %1679 = vxpose.xlu0.b32.cont [11/16] 0.0, 128
            %1680 = vxpose.xlu0.b32.cont [12/16] 0.0, 128
            %1681 = vxpose.xlu0.b32.cont [13/16] 0.0, 128
            %1682 = vxpose.xlu0.b32.cont [14/16] 0.0, 128
            %1683 = vxpose.xlu0.b32.cont [15/16] 0.0, 128
            %1684 = vxpose.xlu0.b32.end [16/16] 0.0, 128
            %v1685 = vpop.trf.xlu0
            %v1686 = vpop.trf.xlu0
            %v1687 = vpop.trf.xlu0
            %v1688 = vpop.trf.xlu0
            %v1689 = vpop.trf.xlu0
            %v1690 = vpop.trf.xlu0
            %v1691 = vpop.trf.xlu0
            %v1692 = vpop.trf.xlu0
            %v1693 = vpop.trf.xlu0
            %v1694 = vpop.trf.xlu0
            %v1695 = vpop.trf.xlu0
            %v1696 = vpop.trf.xlu0
            %v1697 = vpop.trf.xlu0
            %v1698 = vpop.trf.xlu0
            %v1699 = vpop.trf.xlu0
            %v1700 = vpop.trf.xlu0
            %v1701 = vpack.c.bf16 %v1685, %v1685
            %v1702 = vpack.c.bf16 %v1686, %v1686
            %vm1703 = vcmask 519168
            %1704 = vst.msk [vmem:[#allocation6] sm:$0xf] %vm1703, %v1701
            %1705 = vst.msk [vmem:[#allocation6 + $0x4] sm:$0xf] %vm1703, %v1702
          $region64: #{daegc_forward.1} parent=59 // pred_fallthru
            _
          %s1706 = scalar_lea.vmem [#allocation5], %s310
          %v1707 = vld [vmem:[%s1706] sm:$0xff]
          %v1708 = vld [vmem:[%s1706 + $0x8] sm:$0xff]
          %v1709 = vld [vmem:[%s1706 + $0x10] sm:$0xff]
          %v1710 = vld [vmem:[%s1706 + $0x18] sm:$0xff]
          %v1711 = vld [vmem:[%s1706 + $0x20] sm:$0xff]
          %v1712 = vld [vmem:[%s1706 + $0x28] sm:$0xff]
          %v1713 = vld [vmem:[%s1706 + $0x30] sm:$0xff]
          %v1714 = vld [vmem:[%s1706 + $0x38] sm:$0xff]
          %v1715 = vpack.c.bf16 %v1708, %v1707
          %v1716 = vpack.c.bf16 %v1710, %v1709
          %v1717 = vpack.c.bf16 %v1712, %v1711
          %v1718 = vpack.c.bf16 %v1714, %v1713
          %v1719 = vld [vmem:[#allocation6] sm:$0xf]
          %v1720 = vld [vmem:[#allocation6 + $0x4] sm:$0xf]
          %v1723 = vunpack.c.l.b16 %v1719
          %v1724 = vunpack.c.l.b16 %v1720
          %v1725 = vpack.c.b16 %v1724, %v1723
          %vm1727 = vcmask 130048
          %v1729 = vsel %vm1727, %v1715, 0
          %v1732 = vsel %vm1727, %v1716, 0
          %v1735 = vsel %vm1727, %v1717, 0
          %v1738 = vsel %vm1727, %v1718, 0
          %1740 = vmatpush.bf16.msra.mxu0 0
          %1741 = vmatpush.bf16.msra.mxu0 0
          %1742 = vmatpush.bf16.msra.mxu0 0
          %1743 = vmatpush.bf16.msra.mxu0 0
          %1744 = vmatpush.bf16.msra.mxu0 0
          %1745 = vmatpush.bf16.msra.mxu0 0
          %1746 = vmatpush.bf16.msra.mxu0 0
          %1747 = vmatpush.bf16.msra.mxu0 %v1725
          %1748 = vmatmul.bf16.gmra.mxu0 %v1729
          %v1749 = vpop.f32.mrf.mxu0
          %v1750 = vadd.f32 0.0, %v1749
          %v1751 = vpop.f32.mrf.mxu0
          %v1752 = vadd.f32 0.0, %v1751
          %1753 = vmatmul.bf16.gmra.mxu0 %v1732
          %v1754 = vpop.f32.mrf.mxu0
          %v1755 = vadd.f32 0.0, %v1754
          %v1756 = vpop.f32.mrf.mxu0
          %v1757 = vadd.f32 0.0, %v1756
          %1758 = vmatmul.bf16.gmra.mxu0 %v1735
          %v1759 = vpop.f32.mrf.mxu0
          %v1760 = vadd.f32 0.0, %v1759
          %v1761 = vpop.f32.mrf.mxu0
          %v1762 = vadd.f32 0.0, %v1761
          %1763 = vmatmul.bf16.gmra.mxu0 %v1738
          %v1764 = vpop.f32.mrf.mxu0
          %v1765 = vadd.f32 0.0, %v1764
          %v1766 = vpop.f32.mrf.mxu0
          %v1767 = vadd.f32 0.0, %v1766
          %1768 = vdwg.mxu0
          %v1769 = vsub.f32 0.0, %v1750
          %v1770 = vsub.f32 0.0, %v1752
          %v1771 = vsub.f32 0.0, %v1755
          %v1772 = vsub.f32 0.0, %v1757
          %v1773 = vsub.f32 0.0, %v1760
          %v1774 = vsub.f32 0.0, %v1762
          %v1775 = vsub.f32 0.0, %v1765
          %v1776 = vsub.f32 0.0, %v1767
          %v1777 = vmul.f32 %v1769, 1.442695
          %v1778 = vpow.pop %v1777
          %v1779 = vmul.f32 %v1770, 1.442695
          %v1780 = vpow.pop %v1779
          %v1781 = vmul.f32 %v1771, 1.442695
          %v1782 = vpow.pop %v1781
          %v1783 = vmul.f32 %v1772, 1.442695
          %v1784 = vpow.pop %v1783
          %v1785 = vmul.f32 %v1773, 1.442695
          %v1786 = vpow.pop %v1785
          %v1787 = vmul.f32 %v1774, 1.442695
          %v1788 = vpow.pop %v1787
          %v1789 = vmul.f32 %v1775, 1.442695
          %v1790 = vpow.pop %v1789
          %v1791 = vmul.f32 %v1776, 1.442695
          %v1792 = vpow.pop %v1791
          %v1793 = vadd.f32 %v1778, 1.0
          %v1794 = vadd.f32 %v1780, 1.0
          %v1795 = vadd.f32 %v1782, 1.0
          %v1796 = vadd.f32 %v1784, 1.0
          %v1797 = vadd.f32 %v1786, 1.0
          %v1798 = vadd.f32 %v1788, 1.0
          %v1799 = vadd.f32 %v1790, 1.0
          %v1800 = vadd.f32 %v1792, 1.0
          %v1801 = vrcp.pop %v1793
          %v1802 = vrcp.pop %v1794
          %v1803 = vrcp.pop %v1795
          %v1804 = vrcp.pop %v1796
          %v1805 = vrcp.pop %v1797
          %v1806 = vrcp.pop %v1798
          %v1807 = vrcp.pop %v1799
          %v1808 = vrcp.pop %v1800
          %vm1809 = vcmask 523264
          %1810 = vst.msk [vmem:[%s276] sm:$0xff] %vm1809, %v1801
          %1811 = vst.msk [vmem:[%s276 + $0x8] sm:$0xff] %vm1809, %v1802
          %1812 = vst.msk [vmem:[%s276 + $0x10] sm:$0xff] %vm1809, %v1803
          %1813 = vst.msk [vmem:[%s276 + $0x18] sm:$0xff] %vm1809, %v1804
          %1814 = vst.msk [vmem:[%s276 + $0x20] sm:$0xff] %vm1809, %v1805
          %1815 = vst.msk [vmem:[%s276 + $0x28] sm:$0xff] %vm1809, %v1806
          %1816 = vst.msk [vmem:[%s276 + $0x30] sm:$0xff] %vm1809, %v1807
          %1817 = vst.msk [vmem:[%s276 + $0x38] sm:$0xff] %vm1809, %v1808
          %v1818 = vld [vmem:[%s4] sm:$0xff]
          %v1819 = vld [vmem:[%s4 + $0x8] sm:$0xff]
          %v1820 = vmul.f32 %v1818, %v1818
          %v1821 = vmul.f32 %v1819, %v1819
          %vm1822 = vcmask 64512
          %v1823 = vsel %vm1822, %v1820, 0.0
          %v1824 = vsel %vm1822, %v1821, 0.0
          %v1825 = vadd.f32 %v1823, %v1824
          %v1826 = vrot.slane %v1825, 4
          %v1827 = vadd.f32 %v1825, %v1826
          %v1828 = vrot.slane %v1827, 2
          %v1829 = vadd.f32 %v1827, %v1828
          %v1830 = vrot.slane %v1829, 1
          %v1831 = vadd.f32 %v1829, %v1830
          %v1832 = vmul.f32 %v1707, %v1707
          %v1833 = vmul.f32 %v1708, %v1708
          %v1834 = vmul.f32 %v1709, %v1709
          %v1835 = vmul.f32 %v1710, %v1710
          %v1836 = vmul.f32 %v1711, %v1711
          %v1837 = vmul.f32 %v1712, %v1712
          %v1838 = vmul.f32 %v1713, %v1713
          %v1839 = vmul.f32 %v1714, %v1714
          %v1840 = vsel %vm1727, %v1832, 0.0
          %1841 = vadd.xlane.f32.xlu0 %v1840
          %v1842 = vpop.xlane.xlu0 %1841
          %v1843 = vsel %vm1727, %v1833, 0.0
          %1844 = vadd.xlane.f32.xlu0 %v1843
          %v1845 = vpop.xlane.xlu0 %1844
          %v1846 = vsel %vm1727, %v1834, 0.0
          %1847 = vadd.xlane.f32.xlu0 %v1846
          %v1848 = vpop.xlane.xlu0 %1847
          %v1849 = vsel %vm1727, %v1835, 0.0
          %1850 = vadd.xlane.f32.xlu0 %v1849
          %v1851 = vpop.xlane.xlu0 %1850
          %v1852 = vsel %vm1727, %v1836, 0.0
          %1853 = vadd.xlane.f32.xlu0 %v1852
          %v1854 = vpop.xlane.xlu0 %1853
          %v1855 = vsel %vm1727, %v1837, 0.0
          %1856 = vadd.xlane.f32.xlu0 %v1855
          %v1857 = vpop.xlane.xlu0 %1856
          %v1858 = vsel %vm1727, %v1838, 0.0
          %1859 = vadd.xlane.f32.xlu0 %v1858
          %v1860 = vpop.xlane.xlu0 %1859
          %v1861 = vsel %vm1727, %v1839, 0.0
          %1862 = vadd.xlane.f32.xlu0 %v1861
          %v1863 = vpop.xlane.xlu0 %1862
          %v1865 = vsel %vm1727, %v1707, 0
          %v1868 = vsel %vm1727, %v1708, 0
          %v1871 = vsel %vm1727, %v1709, 0
          %v1874 = vsel %vm1727, %v1710, 0
          %v1877 = vsel %vm1727, %v1711, 0
          %v1880 = vsel %vm1727, %v1712, 0
          %v1883 = vsel %vm1727, %v1713, 0
          %v1886 = vsel %vm1727, %v1714, 0
          %1888 = vmatpush.msra.mxu0 0.0
          %1889 = vmatpush.msra.mxu0 0.0
          %1890 = vmatpush.msra.mxu0 0.0
          %1891 = vmatpush.msra.mxu0 0.0
          %1892 = vmatpush.msra.mxu0 0.0
          %1893 = vmatpush.msra.mxu0 0.0
          %1894 = vmatpush.msra.mxu0 0.0
          %1895 = vmatpush.msra.mxu0 0.0
          %1896 = vmatpush.msra.mxu0 0.0
          %1897 = vmatpush.msra.mxu0 0.0
          %1898 = vmatpush.msra.mxu0 0.0
          %1899 = vmatpush.msra.mxu0 0.0
          %1900 = vmatpush.msra.mxu0 0.0
          %1901 = vmatpush.msra.mxu0 0.0
          %1902 = vmatpush.msra.mxu0 %v1819
          %1903 = vmatpush.msra.mxu0 %v1818
          %1904 = vmatmul.f32.gmra.mxu0 %v1865
          %v1905 = vpop.f32.mrf.mxu0
          %v1906 = vadd.f32 0.0, %v1905
          %1907 = vmatmul.f32.gmra.mxu0 %v1868
          %v1908 = vpop.f32.mrf.mxu0
          %v1909 = vadd.f32 0.0, %v1908
          %1910 = vmatmul.f32.gmra.mxu0 %v1871
          %v1911 = vpop.f32.mrf.mxu0
          %v1912 = vadd.f32 0.0, %v1911
          %1913 = vmatmul.f32.gmra.mxu0 %v1874
          %v1914 = vpop.f32.mrf.mxu0
          %v1915 = vadd.f32 0.0, %v1914
          %1916 = vmatmul.f32.gmra.mxu0 %v1877
          %v1917 = vpop.f32.mrf.mxu0
          %v1918 = vadd.f32 0.0, %v1917
          %1919 = vmatmul.f32.gmra.mxu0 %v1880
          %v1920 = vpop.f32.mrf.mxu0
          %v1921 = vadd.f32 0.0, %v1920
          %1922 = vmatmul.f32.gmra.mxu0 %v1883
          %v1923 = vpop.f32.mrf.mxu0
          %v1924 = vadd.f32 0.0, %v1923
          %1925 = vmatmul.f32.gmra.mxu0 %v1886
          %v1926 = vpop.f32.mrf.mxu0
          %v1927 = vadd.f32 0.0, %v1926
          %1928 = vdwg.mxu0
          %v1929 = vadd.f32 %v1842, %v1831
          %v1930 = vadd.f32 %v1845, %v1831
          %v1931 = vadd.f32 %v1848, %v1831
          %v1932 = vadd.f32 %v1851, %v1831
          %v1933 = vadd.f32 %v1854, %v1831
          %v1934 = vadd.f32 %v1857, %v1831
          %v1935 = vadd.f32 %v1860, %v1831
          %v1936 = vadd.f32 %v1863, %v1831
          %v1937 = vmul.f32 %v1906, 2.0
          %v1938 = vmul.f32 %v1909, 2.0
          %v1939 = vmul.f32 %v1912, 2.0
          %v1940 = vmul.f32 %v1915, 2.0
          %v1941 = vmul.f32 %v1918, 2.0
          %v1942 = vmul.f32 %v1921, 2.0
          %v1943 = vmul.f32 %v1924, 2.0
          %v1944 = vmul.f32 %v1927, 2.0
          %v1945 = vsub.f32 %v1929, %v1937
          %v1946 = vsub.f32 %v1930, %v1938
          %v1947 = vsub.f32 %v1931, %v1939
          %v1948 = vsub.f32 %v1932, %v1940
          %v1949 = vsub.f32 %v1933, %v1941
          %v1950 = vsub.f32 %v1934, %v1942
          %v1951 = vsub.f32 %v1935, %v1943
          %v1952 = vsub.f32 %v1936, %v1944
          %v1953 = vmax.f32 %v1945, 0.0
          %v1954 = vmax.f32 %v1946, 0.0
          %v1955 = vmax.f32 %v1947, 0.0
          %v1956 = vmax.f32 %v1948, 0.0
          %v1957 = vmax.f32 %v1949, 0.0
          %v1958 = vmax.f32 %v1950, 0.0
          %v1959 = vmax.f32 %v1951, 0.0
          %v1960 = vmax.f32 %v1952, 0.0
          %v1961 = vadd.f32 %v1953, 1.0
          %v1962 = vadd.f32 %v1954, 1.0
          %v1963 = vadd.f32 %v1955, 1.0
          %v1964 = vadd.f32 %v1956, 1.0
          %v1965 = vadd.f32 %v1957, 1.0
          %v1966 = vadd.f32 %v1958, 1.0
          %v1967 = vadd.f32 %v1959, 1.0
          %v1968 = vadd.f32 %v1960, 1.0
          %v1969 = vrcp.pop %v1961
          %v1970 = vmul.f32 %v1961, %v1969
          %v1971 = vsub.f32 1.0, %v1970
          %v1972 = vmul.f32 %v1969, %v1971
          %v1973 = vadd.f32 %v1969, %v1972
          %vm1974 = vweird.f32 %v1961
          %vm1975 = vweird.f32 %v1969
          %vm1976 = vmor %vm1974, %vm1975
          %v1977 = vsel %vm1976, %v1969, %v1973
          %v1978 = vand.u32 2147483647, %v1961
          %vm1979 = vcmp.eq.f32.partialorder %v1978, 8.507059e+37
          %v1980 = vand.u32 %v1961, 2147483648
          %v1981 = vor.u32 1.1754944e-38, %v1980
          %v1982 = vsel %vm1979, %v1981, %v1977
          %v1983 = vmul.f32 1.0, %v1982
          %v1984 = vrcp.pop %v1962
          %v1985 = vmul.f32 %v1962, %v1984
          %v1986 = vsub.f32 1.0, %v1985
          %v1987 = vmul.f32 %v1984, %v1986
          %v1988 = vadd.f32 %v1984, %v1987
          %vm1989 = vweird.f32 %v1962
          %vm1990 = vweird.f32 %v1984
          %vm1991 = vmor %vm1989, %vm1990
          %v1992 = vsel %vm1991, %v1984, %v1988
          %v1993 = vand.u32 2147483647, %v1962
          %vm1994 = vcmp.eq.f32.partialorder %v1993, 8.507059e+37
          %v1995 = vand.u32 %v1962, 2147483648
          %v1996 = vor.u32 1.1754944e-38, %v1995
          %v1997 = vsel %vm1994, %v1996, %v1992
          %v1998 = vmul.f32 1.0, %v1997
          %v1999 = vrcp.pop %v1963
          %v2000 = vmul.f32 %v1963, %v1999
          %v2001 = vsub.f32 1.0, %v2000
          %v2002 = vmul.f32 %v1999, %v2001
          %v2003 = vadd.f32 %v1999, %v2002
          %vm2004 = vweird.f32 %v1963
          %vm2005 = vweird.f32 %v1999
          %vm2006 = vmor %vm2004, %vm2005
          %v2007 = vsel %vm2006, %v1999, %v2003
          %v2008 = vand.u32 2147483647, %v1963
          %vm2009 = vcmp.eq.f32.partialorder %v2008, 8.507059e+37
          %v2010 = vand.u32 %v1963, 2147483648
          %v2011 = vor.u32 1.1754944e-38, %v2010
          %v2012 = vsel %vm2009, %v2011, %v2007
          %v2013 = vmul.f32 1.0, %v2012
          %v2014 = vrcp.pop %v1964
          %v2015 = vmul.f32 %v1964, %v2014
          %v2016 = vsub.f32 1.0, %v2015
          %v2017 = vmul.f32 %v2014, %v2016
          %v2018 = vadd.f32 %v2014, %v2017
          %vm2019 = vweird.f32 %v1964
          %vm2020 = vweird.f32 %v2014
          %vm2021 = vmor %vm2019, %vm2020
          %v2022 = vsel %vm2021, %v2014, %v2018
          %v2023 = vand.u32 2147483647, %v1964
          %vm2024 = vcmp.eq.f32.partialorder %v2023, 8.507059e+37
          %v2025 = vand.u32 %v1964, 2147483648
          %v2026 = vor.u32 1.1754944e-38, %v2025
          %v2027 = vsel %vm2024, %v2026, %v2022
          %v2028 = vmul.f32 1.0, %v2027
          %v2029 = vrcp.pop %v1965
          %v2030 = vmul.f32 %v1965, %v2029
          %v2031 = vsub.f32 1.0, %v2030
          %v2032 = vmul.f32 %v2029, %v2031
          %v2033 = vadd.f32 %v2029, %v2032
          %vm2034 = vweird.f32 %v1965
          %vm2035 = vweird.f32 %v2029
          %vm2036 = vmor %vm2034, %vm2035
          %v2037 = vsel %vm2036, %v2029, %v2033
          %v2038 = vand.u32 2147483647, %v1965
          %vm2039 = vcmp.eq.f32.partialorder %v2038, 8.507059e+37
          %v2040 = vand.u32 %v1965, 2147483648
          %v2041 = vor.u32 1.1754944e-38, %v2040
          %v2042 = vsel %vm2039, %v2041, %v2037
          %v2043 = vmul.f32 1.0, %v2042
          %v2044 = vrcp.pop %v1966
          %v2045 = vmul.f32 %v1966, %v2044
          %v2046 = vsub.f32 1.0, %v2045
          %v2047 = vmul.f32 %v2044, %v2046
          %v2048 = vadd.f32 %v2044, %v2047
          %vm2049 = vweird.f32 %v1966
          %vm2050 = vweird.f32 %v2044
          %vm2051 = vmor %vm2049, %vm2050
          %v2052 = vsel %vm2051, %v2044, %v2048
          %v2053 = vand.u32 2147483647, %v1966
          %vm2054 = vcmp.eq.f32.partialorder %v2053, 8.507059e+37
          %v2055 = vand.u32 %v1966, 2147483648
          %v2056 = vor.u32 1.1754944e-38, %v2055
          %v2057 = vsel %vm2054, %v2056, %v2052
          %v2058 = vmul.f32 1.0, %v2057
          %v2059 = vrcp.pop %v1967
          %v2060 = vmul.f32 %v1967, %v2059
          %v2061 = vsub.f32 1.0, %v2060
          %v2062 = vmul.f32 %v2059, %v2061
          %v2063 = vadd.f32 %v2059, %v2062
          %vm2064 = vweird.f32 %v1967
          %vm2065 = vweird.f32 %v2059
          %vm2066 = vmor %vm2064, %vm2065
          %v2067 = vsel %vm2066, %v2059, %v2063
          %v2068 = vand.u32 2147483647, %v1967
          %vm2069 = vcmp.eq.f32.partialorder %v2068, 8.507059e+37
          %v2070 = vand.u32 %v1967, 2147483648
          %v2071 = vor.u32 1.1754944e-38, %v2070
          %v2072 = vsel %vm2069, %v2071, %v2067
          %v2073 = vmul.f32 1.0, %v2072
          %v2074 = vrcp.pop %v1968
          %v2075 = vmul.f32 %v1968, %v2074
          %v2076 = vsub.f32 1.0, %v2075
          %v2077 = vmul.f32 %v2074, %v2076
          %v2078 = vadd.f32 %v2074, %v2077
          %vm2079 = vweird.f32 %v1968
          %vm2080 = vweird.f32 %v2074
          %vm2081 = vmor %vm2079, %vm2080
          %v2082 = vsel %vm2081, %v2074, %v2078
          %v2083 = vand.u32 2147483647, %v1968
          %vm2084 = vcmp.eq.f32.partialorder %v2083, 8.507059e+37
          %v2085 = vand.u32 %v1968, 2147483648
          %v2086 = vor.u32 1.1754944e-38, %v2085
          %v2087 = vsel %vm2084, %v2086, %v2082
          %v2088 = vmul.f32 1.0, %v2087
          %v2089 = vsel %vm1822, %v1983, 0.0
          %2090 = vadd.xlane.f32.xlu0 %v2089
          %v2091 = vpop.xlane.xlu0 %2090
          %v2092 = vsel %vm1822, %v1998, 0.0
          %2093 = vadd.xlane.f32.xlu0 %v2092
          %v2094 = vpop.xlane.xlu0 %2093
          %v2095 = vsel %vm1822, %v2013, 0.0
          %2096 = vadd.xlane.f32.xlu0 %v2095
          %v2097 = vpop.xlane.xlu0 %2096
          %v2098 = vsel %vm1822, %v2028, 0.0
          %2099 = vadd.xlane.f32.xlu0 %v2098
          %v2100 = vpop.xlane.xlu0 %2099
          %v2101 = vsel %vm1822, %v2043, 0.0
          %2102 = vadd.xlane.f32.xlu0 %v2101
          %v2103 = vpop.xlane.xlu0 %2102
          %v2104 = vsel %vm1822, %v2058, 0.0
          %2105 = vadd.xlane.f32.xlu0 %v2104
          %v2106 = vpop.xlane.xlu0 %2105
          %v2107 = vsel %vm1822, %v2073, 0.0
          %2108 = vadd.xlane.f32.xlu0 %v2107
          %v2109 = vpop.xlane.xlu0 %2108
          %v2110 = vsel %vm1822, %v2088, 0.0
          %2111 = vadd.xlane.f32.xlu0 %v2110
          %v2112 = vpop.xlane.xlu0 %2111
          %v2113 = vrcp.pop %v2091
          %v2114 = vmul.f32 %v2091, %v2113
          %v2115 = vsub.f32 1.0, %v2114
          %v2116 = vmul.f32 %v2113, %v2115
          %v2117 = vadd.f32 %v2113, %v2116
          %vm2118 = vweird.f32 %v2091
          %vm2119 = vweird.f32 %v2113
          %vm2120 = vmor %vm2118, %vm2119
          %v2121 = vsel %vm2120, %v2113, %v2117
          %v2122 = vand.u32 2147483647, %v2091
          %vm2123 = vcmp.eq.f32.partialorder %v2122, 8.507059e+37
          %v2124 = vand.u32 %v2091, 2147483648
          %v2125 = vor.u32 1.1754944e-38, %v2124
          %v2126 = vsel %vm2123, %v2125, %v2121
          %v2127 = vmul.f32 %v1983, %v2126
          %v2128 = vrcp.pop %v2094
          %v2129 = vmul.f32 %v2094, %v2128
          %v2130 = vsub.f32 1.0, %v2129
          %v2131 = vmul.f32 %v2128, %v2130
          %v2132 = vadd.f32 %v2128, %v2131
          %vm2133 = vweird.f32 %v2094
          %vm2134 = vweird.f32 %v2128
          %vm2135 = vmor %vm2133, %vm2134
          %v2136 = vsel %vm2135, %v2128, %v2132
          %v2137 = vand.u32 2147483647, %v2094
          %vm2138 = vcmp.eq.f32.partialorder %v2137, 8.507059e+37
          %v2139 = vand.u32 %v2094, 2147483648
          %v2140 = vor.u32 1.1754944e-38, %v2139
          %v2141 = vsel %vm2138, %v2140, %v2136
          %v2142 = vmul.f32 %v1998, %v2141
          %v2143 = vrcp.pop %v2097
          %v2144 = vmul.f32 %v2097, %v2143
          %v2145 = vsub.f32 1.0, %v2144
          %v2146 = vmul.f32 %v2143, %v2145
          %v2147 = vadd.f32 %v2143, %v2146
          %vm2148 = vweird.f32 %v2097
          %vm2149 = vweird.f32 %v2143
          %vm2150 = vmor %vm2148, %vm2149
          %v2151 = vsel %vm2150, %v2143, %v2147
          %v2152 = vand.u32 2147483647, %v2097
          %vm2153 = vcmp.eq.f32.partialorder %v2152, 8.507059e+37
          %v2154 = vand.u32 %v2097, 2147483648
          %v2155 = vor.u32 1.1754944e-38, %v2154
          %v2156 = vsel %vm2153, %v2155, %v2151
          %v2157 = vmul.f32 %v2013, %v2156
          %v2158 = vrcp.pop %v2100
          %v2159 = vmul.f32 %v2100, %v2158
          %v2160 = vsub.f32 1.0, %v2159
          %v2161 = vmul.f32 %v2158, %v2160
          %v2162 = vadd.f32 %v2158, %v2161
          %vm2163 = vweird.f32 %v2100
          %vm2164 = vweird.f32 %v2158
          %vm2165 = vmor %vm2163, %vm2164
          %v2166 = vsel %vm2165, %v2158, %v2162
          %v2167 = vand.u32 2147483647, %v2100
          %vm2168 = vcmp.eq.f32.partialorder %v2167, 8.507059e+37
          %v2169 = vand.u32 %v2100, 2147483648
          %v2170 = vor.u32 1.1754944e-38, %v2169
          %v2171 = vsel %vm2168, %v2170, %v2166
          %v2172 = vmul.f32 %v2028, %v2171
          %v2173 = vrcp.pop %v2103
          %v2174 = vmul.f32 %v2103, %v2173
          %v2175 = vsub.f32 1.0, %v2174
          %v2176 = vmul.f32 %v2173, %v2175
          %v2177 = vadd.f32 %v2173, %v2176
          %vm2178 = vweird.f32 %v2103
          %vm2179 = vweird.f32 %v2173
          %vm2180 = vmor %vm2178, %vm2179
          %v2181 = vsel %vm2180, %v2173, %v2177
          %v2182 = vand.u32 2147483647, %v2103
          %vm2183 = vcmp.eq.f32.partialorder %v2182, 8.507059e+37
          %v2184 = vand.u32 %v2103, 2147483648
          %v2185 = vor.u32 1.1754944e-38, %v2184
          %v2186 = vsel %vm2183, %v2185, %v2181
          %v2187 = vmul.f32 %v2043, %v2186
          %v2188 = vrcp.pop %v2106
          %v2189 = vmul.f32 %v2106, %v2188
          %v2190 = vsub.f32 1.0, %v2189
          %v2191 = vmul.f32 %v2188, %v2190
          %v2192 = vadd.f32 %v2188, %v2191
          %vm2193 = vweird.f32 %v2106
          %vm2194 = vweird.f32 %v2188
          %vm2195 = vmor %vm2193, %vm2194
          %v2196 = vsel %vm2195, %v2188, %v2192
          %v2197 = vand.u32 2147483647, %v2106
          %vm2198 = vcmp.eq.f32.partialorder %v2197, 8.507059e+37
          %v2199 = vand.u32 %v2106, 2147483648
          %v2200 = vor.u32 1.1754944e-38, %v2199
          %v2201 = vsel %vm2198, %v2200, %v2196
          %v2202 = vmul.f32 %v2058, %v2201
          %v2203 = vrcp.pop %v2109
          %v2204 = vmul.f32 %v2109, %v2203
          %v2205 = vsub.f32 1.0, %v2204
          %v2206 = vmul.f32 %v2203, %v2205
          %v2207 = vadd.f32 %v2203, %v2206
          %vm2208 = vweird.f32 %v2109
          %vm2209 = vweird.f32 %v2203
          %vm2210 = vmor %vm2208, %vm2209
          %v2211 = vsel %vm2210, %v2203, %v2207
          %v2212 = vand.u32 2147483647, %v2109
          %vm2213 = vcmp.eq.f32.partialorder %v2212, 8.507059e+37
          %v2214 = vand.u32 %v2109, 2147483648
          %v2215 = vor.u32 1.1754944e-38, %v2214
          %v2216 = vsel %vm2213, %v2215, %v2211
          %v2217 = vmul.f32 %v2073, %v2216
          %v2218 = vrcp.pop %v2112
          %v2219 = vmul.f32 %v2112, %v2218
          %v2220 = vsub.f32 1.0, %v2219
          %v2221 = vmul.f32 %v2218, %v2220
          %v2222 = vadd.f32 %v2218, %v2221
          %vm2223 = vweird.f32 %v2112
          %vm2224 = vweird.f32 %v2218
          %vm2225 = vmor %vm2223, %vm2224
          %v2226 = vsel %vm2225, %v2218, %v2222
          %v2227 = vand.u32 2147483647, %v2112
          %vm2228 = vcmp.eq.f32.partialorder %v2227, 8.507059e+37
          %v2229 = vand.u32 %v2112, 2147483648
          %v2230 = vor.u32 1.1754944e-38, %v2229
          %v2231 = vsel %vm2228, %v2230, %v2226
          %v2232 = vmul.f32 %v2088, %v2231
          %2241 = vrot.lane.b32.xlu0 %v2127, 16
          %v2242 = vpop.permute.xlu0 %2241
          %2243 = vrot.lane.b32.xlu0 %v2142, 16
          %v2244 = vpop.permute.xlu0 %2243
          %2245 = vrot.lane.b32.xlu0 %v2157, 16
          %v2246 = vpop.permute.xlu0 %2245
          %2247 = vrot.lane.b32.xlu0 %v2172, 16
          %v2248 = vpop.permute.xlu0 %2247
          %2249 = vrot.lane.b32.xlu0 %v2187, 16
          %v2250 = vpop.permute.xlu0 %2249
          %2251 = vrot.lane.b32.xlu0 %v2202, 16
          %v2252 = vpop.permute.xlu0 %2251
          %2253 = vrot.lane.b32.xlu0 %v2217, 16
          %v2254 = vpop.permute.xlu0 %2253
          %2255 = vrot.lane.b32.xlu0 %v2232, 16
          %v2256 = vpop.permute.xlu0 %2255
          %v2265 = vsel %vm1727, %v1707, %v2242
          %v2266 = vsel %vm1727, %v1708, %v2244
          %v2267 = vsel %vm1727, %v1709, %v2246
          %v2268 = vsel %vm1727, %v1710, %v2248
          %v2269 = vsel %vm1727, %v1711, %v2250
          %v2270 = vsel %vm1727, %v1712, %v2252
          %v2271 = vsel %vm1727, %v1713, %v2254
          %v2272 = vsel %vm1727, %v1714, %v2256
          %vm2273 = vcmask 195584
          %v2274 = vsel %vm2273, %v2265, 0.0
          %v2275 = vsel %vm2273, %v2266, 0.0
          %v2276 = vsel %vm2273, %v2267, 0.0
          %v2277 = vsel %vm2273, %v2268, 0.0
          %v2278 = vsel %vm2273, %v2269, 0.0
          %v2279 = vsel %vm2273, %v2270, 0.0
          %v2280 = vsel %vm2273, %v2271, 0.0
          %v2281 = vsel %vm2273, %v2272, 0.0
          %2282 = vst [vmem:[%s305] sm:$0xff] %v2274
          %2283 = vst [vmem:[%s305 + $0x8] sm:$0xff] %v2275
          %2284 = vst [vmem:[%s305 + $0x10] sm:$0xff] %v2276
          %2285 = vst [vmem:[%s305 + $0x18] sm:$0xff] %v2277
          %2286 = vst [vmem:[%s305 + $0x20] sm:$0xff] %v2278
          %2287 = vst [vmem:[%s305 + $0x28] sm:$0xff] %v2279
          %2288 = vst [vmem:[%s305 + $0x30] sm:$0xff] %v2280
          %2289 = vst [vmem:[%s305 + $0x38] sm:$0xff] %v2281
        $region60: #{daegc_forward.1} parent=39 // pred_fallthru
          _
        %s2290 = sand.u32 %s159, 1
        %s2291 = scalar_lea.sflag [#allocation10], %s2290
        %s2292 = sand.u32 %s159, 1
        %s2293 = smul.addr %s2292, 64
        %s2294 = scalar_lea.vmem [#allocation9], %s2293
        %p2295 = scmp.eq.s32.totalorder %s25, 2
        %s2296 = scalar_select %p2295, %s26, 0
        %s2297 = smul.u32 8, %s2296
        %p2298 = scmp.lt.s32.totalorder %s2297, 7
        %s2299 = scalar_select %p2298, %s2297, 7
        %s2300 = smul.addr %s2299, 8
        %s2301 = scalar_lea.vmem %s6, %s2300
        // Predicated region
        $region65: #{daegc_forward.1} parent=39 // pred_check
          %p2302 = pneg %p169
        $region66: #{daegc_forward.1} parent=39 // pred_check_branch
          %2304 = sbr.rel (%p2302) target = $region68
        $region67: #{daegc_forward.1} parent=39 // pred_region
          %p2305 = scmp.eq.s32.totalorder %s25, 2
          %s2306 = scalar_select %p2305, %s26, 0
          %s2307 = smul.u32 8, %s2306
          %2309 = vsyncadd %s2291, 0
          %s2310 = smul.addr %s2307, 8
          %s2311 = scalar_lea.hbm %s5, %s2310
          %s2312 = sshll.u32 %s2294, 4
          %s2313 = int_to_ptr.vmem [resolvable:$true] %s2312
          %s2314 = sshll.u32 %s2311, 4
          %s2315 = int_to_ptr.hbm [resolvable:$true] %s2314
          %2320 = dma.vmem_to_hbm [thread:$0]  %s2313, 1024, %s2315, %s2291, 128, 128, 8
        $region68: #{daegc_forward.1} parent=39 // pred_fallthru
          _
        // Predicated region
        $region69: #{daegc_forward.1} parent=39 // pred_check
          %p2321 = pneg %p199
        $region70: #{daegc_forward.1} parent=39 // pred_check_branch
          %2323 = sbr.rel (%p2321) target = $region72
        $region71: #{daegc_forward.1} parent=39 // pred_region
          %p2324 = scmp.eq.s32.totalorder %s25, 2
          %s2325 = scalar_select %p2324, %s26, 0
          %s2326 = smul.u32 8, %s2325
        $region72: #{daegc_forward.1} parent=39 // pred_fallthru
          _
      $region40: #{daegc_forward.1} parent=5 // pred_fallthru
        _
      %p2327 = scmp.le.s32.totalorder 2, %s16
      // Predicated region
      $region73: #{daegc_forward.1} parent=5 // pred_check
        %p2328 = pneg %p2327
      $region74: #{daegc_forward.1} parent=5 // pred_check_branch
        %2330 = sbr.rel (%p2328) target = $region76
      $region75: #{daegc_forward.1} parent=5 // pred_region
        %s2331 = ssub.s32 %s16, 2
        // Predicated region
        $region77: #{daegc_forward.1} parent=75 // pred_check
          %p2332 = pneg %p175
        $region78: #{daegc_forward.1} parent=75 // pred_check_branch
          %2334 = sbr.rel (%p2332) target = $region80
        $region79: #{daegc_forward.1} parent=75 // pred_region
          %s2335 = sand.u32 %s160, 1
          %s2336 = scalar_lea.sflag [#allocation10], %s2335
          %s2337 = sand.u32 %s160, 1
          %s2338 = smul.addr %s2337, 64
          %s2339 = scalar_lea.vmem [#allocation9], %s2338
          %2341 = dma.done %s2336, 1024
        $region80: #{daegc_forward.1} parent=75 // pred_fallthru
          _
        // Predicated region
        $region81: #{daegc_forward.1} parent=75 // pred_check
          %p2342 = pneg %p205
        $region82: #{daegc_forward.1} parent=75 // pred_check_branch
          %2344 = sbr.rel (%p2342) target = $region84
        $region83: #{daegc_forward.1} parent=75 // pred_region
          %p2345 = scmp.eq.s32.totalorder %s27, 2
          %s2346 = scalar_select %p2345, %s28, 0
          %s2347 = smul.u32 8, %s2346
          %p2348 = scmp.lt.s32.totalorder %s2347, 7
          %s2349 = scalar_select %p2348, %s2347, 7
          %s2350 = smul.addr %s2349, 8
          %s2351 = scalar_lea.vmem %s6, %s2350
        $region84: #{daegc_forward.1} parent=75 // pred_fallthru
          _
      $region76: #{daegc_forward.1} parent=5 // pred_fallthru
        _
    $region6: #{daegc_forward.1} parent=1 // loop_footer
      %s20 = sadd.s32 1, %s16
    $region7: #{daegc_forward.1} parent=1 // loop_footer_branch
      %15 = sbr.rel target = $region3
    $region8: #{daegc_forward.1} parent=1 // loop_exit
      _
    %2352 = vsyncpa [#allocation10], 1
    %s2353 = scalar_lea.sflag [#allocation10], 1
    %2354 = vsyncpa %s2353, 1

</llo_original>
